<compile_context>
chip_gen: v5e
topology: v5e:2x2
jax: 0.10.0
libtpu: 0.0.40
codegen_flags: <defaults>
</compile_context>

<pallas_src>
import jax
import jax.numpy as jnp
from jax.experimental import pallas as pl
from jax.experimental.pallas import tpu as pltpu


def mytc_forward(x_nchw, origin_nchw, wt, bt, wc, bc):
    """x: (N,ch1,H,W), origin: (N,kn,2H,2W); wt: (ch1,ch2,2,2), bt: (ch2,);
    wc: (ch2, ch2+kn, 3, 3), bc: (ch2,).  Returns (N, ch2, 2H, 2W) like the torch module."""
    f32 = jnp.float32
    N, Cin, H, W = x_nchw.shape
    _, Kn, Ho, Wo = origin_nchw.shape
    Cup = wt.shape[1]                     # ch2 (transconv out channels)
    Cout = wc.shape[0]                    # ch2 (conv out channels)
    Ctot = Cup + Kn
    assert Ho == 2 * H and Wo == 2 * W and wc.shape[1] == Ctot

    UPW = Wo * Cup                        # up-channel slots per row-planar row
    PADW = Wo * Ctot                      # full concatenated row width (up | origin)

    # ---------- row-planar inputs (single cheap relayout of the raw inputs) ----------
    x_rows = jnp.transpose(x_nchw, (0, 2, 3, 1)).reshape(N, H, W * Cin)
    og_rows = jnp.transpose(origin_nchw, (0, 2, 3, 1)).reshape(N, Ho, Wo * Kn)

    # ---------- ConvTranspose2d as 2 row matmuls: G[ki]: (W*Cin, Wo*Cup) ----------
    # G[ki][w*Cin+ci, (2w+kj)*Cup+co] = wt[ci, co, ki, kj]   (block-diagonal over w)
    B = jnp.transpose(wt, (2, 0, 3, 1)).reshape(2, Cin, 2 * Cup)          # (ki, ci, (kj,co))
    G = jnp.einsum('wv,kic->kwivc', jnp.eye(W, dtype=f32), B)
    G = G.reshape(2, W * Cin, W * 2 * Cup).astype(f32)                    # (2, W*Cin, Wo*Cup)
    bt_row = jnp.tile(bt, Wo)[None, :].astype(f32)                        # (1, Wo*Cup)

    # ---------- Conv2d(3x3,pad=1) as 3 banded row matmuls: T[ki]: (PADW, Wo*Cout) ----------
    # T[ki][w*Cup+c, w'*Cout+co]          = wc[co, c,      ki, w-w'+1]   (up channels)
    # T[ki][UPW + w*Kn+k, w'*Cout+co]     = wc[co, Cup+k,  ki, w-w'+1]   (origin channels)
    # zero outside the 3-wide band -> W-direction zero padding is absorbed into T.
    w_idx = jnp.arange(Wo)
    kj = w_idx[:, None] - w_idx[None, :] + 1                              # (w, w') -> kj
    valid = ((kj >= 0) & (kj <= 2)).astype(f32)
    taps = jnp.transpose(wc, (2, 3, 1, 0)).astype(f32)                    # (ki, kj, c, co)
    Tf = taps[:, jnp.clip(kj, 0, 2), :, :] * valid[None, :, :, None, None]  # (3, w, w', c, co)
    Tf = jnp.transpose(Tf, (0, 1, 3, 2, 4))                               # (3, w, c, w', co)
    T_up = Tf[:, :, :Cup].reshape(3, Wo * Cup, Wo * Cout)
    T_og = Tf[:, :, Cup:].reshape(3, Wo * Kn, Wo * Cout)
    T = jnp.concatenate([T_up, T_og], axis=1)                             # (3, PADW, Wo*Cout)
    bc_row = jnp.tile(bc, Wo)[None, :].astype(f32)                        # (1, Wo*Cout)

    # ---------- fused kernel: one batch element per grid step ----------
    def kernel(xr_ref, og_ref, g_ref, btr_ref, t_ref, bcr_ref, o_ref, pad_ref):
        # Stage 1: ConvTranspose2d(k=2,s=2) + bias + ReLU; one matmul per output-row parity.
        x_r = xr_ref[0]                                                   # (H, W*Cin)
        up0 = jnp.maximum(
            jnp.dot(x_r, g_ref[0], preferred_element_type=jnp.float32) + btr_ref[...], 0.0)
        up1 = jnp.maximum(
            jnp.dot(x_r, g_ref[1], preferred_element_type=jnp.float32) + btr_ref[...], 0.0)

        # Stage 2: assemble zero-padded, channel-concatenated rows in the VMEM scratch:
        #   pad row 1+r = [ up channels (UPW lanes) | origin channels (PADW-UPW lanes) ]
        zrow = jnp.zeros((1, PADW), jnp.float32)
        pad_ref[0:1, :] = zrow                          # top halo row
        pad_ref[Ho + 1:Ho + 2, :] = zrow                # bottom halo row
        pad_ref[1:Ho + 1, UPW:PADW] = og_ref[0]         # skip connection, all rows at once
        for h in range(H):                              # H interleave = plain row addressing
            pad_ref[1 + 2 * h:2 + 2 * h, 0:UPW] = up0[h:h + 1, :]
            pad_ref[2 + 2 * h:3 + 2 * h, 0:UPW] = up1[h:h + 1, :]

        # Stage 3: Conv2d(3x3,pad=1) + bias + ReLU; three banded matmuls (one per row tap).
        acc = jnp.dot(pad_ref[0:Ho, :], t_ref[0], preferred_element_type=jnp.float32)
        acc += jnp.dot(pad_ref[1:Ho + 1, :], t_ref[1], preferred_element_type=jnp.float32)
        acc += jnp.dot(pad_ref[2:Ho + 2, :], t_ref[2], preferred_element_type=jnp.float32)
        o_ref[0] = jnp.maximum(acc + bcr_ref[...], 0.0)   # lane-dense (Ho, Wo*Cout) store

    out_rows = pl.pallas_call(
        kernel,
        out_shape=jax.ShapeDtypeStruct((N, Ho, Wo * Cout), f32),
        grid_spec=pltpu.PrefetchScalarGridSpec(
            num_scalar_prefetch=0,
            grid=(N,),
            in_specs=[
                pl.BlockSpec((1, H, W * Cin), lambda n: (n, 0, 0)),
                pl.BlockSpec((1, Ho, Wo * Kn), lambda n: (n, 0, 0)),
                pl.BlockSpec((2, W * Cin, Wo * Cup), lambda n: (0, 0, 0)),   # weights: DMA'd once
                pl.BlockSpec((1, Wo * Cup), lambda n: (0, 0)),
                pl.BlockSpec((3, PADW, Wo * Cout), lambda n: (0, 0, 0)),
                pl.BlockSpec((1, Wo * Cout), lambda n: (0, 0)),
            ],
            out_specs=pl.BlockSpec((1, Ho, Wo * Cout), lambda n: (n, 0, 0)),
            scratch_shapes=[pltpu.VMEM((Ho + 2, PADW), f32)],
        ),
        compiler_params=pltpu.CompilerParams(
            dimension_semantics=("parallel",),          # pipelining + v7x 2-TC split over batch
            vmem_limit_bytes=64 * 1024 * 1024,
        ),
    )(x_rows, og_rows, G, bt_row, T, bc_row)

    # free reshape + the single unavoidable NHWC->NCHW transpose of the small output
    return jnp.transpose(out_rows.reshape(N, Ho, Wo, Cout), (0, 3, 1, 2))


# ---------------- pure-JAX reference (mirrors the PyTorch semantics) ----------------
def _reference(x, origin, wt, bt, wc, bc):
    N, Cin, H, W = x.shape
    Cup, Cout = wt.shape[1], wc.shape[0]
    Ho, Wo = 2 * H, 2 * W
    up = jnp.einsum('nchw,cdij->ndhiwj', x, wt).reshape(N, Cup, Ho, Wo)
    up = jnp.maximum(up + bt[None, :, None, None], 0.0)
    cat = jnp.concatenate([up, origin], axis=1)
    catp = jnp.pad(cat, ((0, 0), (0, 0), (1, 1), (1, 1)))
    out = jnp.zeros((N, Cout, Ho, Wo), jnp.float32)
    for ki in range(3):
        for kj in range(3):
            out = out + jnp.einsum('nchw,dc->ndhw',
                                   catp[:, :, ki:ki + Ho, kj:kj + Wo], wc[:, :, ki, kj])
    return jnp.maximum(out + bc[None, :, None, None], 0.0)


if __name__ == "__main__":
    ch1, ch2, kn = 8, 4, 4
    N, H, W = 2, 16, 16

    key = jax.random.PRNGKey(0)
    k = jax.random.split(key, 6)
    x = jax.random.normal(k[0], (N, ch1, H, W), jnp.float32)               # NCHW
    origin = jax.random.normal(k[1], (N, kn, 2 * H, 2 * W), jnp.float32)   # NCHW skip input

    # PyTorch-native parameter layouts:
    wt = 0.1 * jax.random.normal(k[2], (ch1, ch2, 2, 2), jnp.float32)      # ConvTranspose2d.weight
    bt = 0.1 * jax.random.normal(k[3], (ch2,), jnp.float32)
    wc = 0.1 * jax.random.normal(k[4], (ch2, ch2 + kn, 3, 3), jnp.float32)  # Conv2d.weight
    bc = 0.1 * jax.random.normal(k[5], (ch2,), jnp.float32)

    out = jax.jit(mytc_forward)(x, origin, wt, bt, wc, bc)
    jax.block_until_ready(out)
    assert out.shape == (N, ch2, 2 * H, 2 * W), out.shape

    ref = _reference(x, origin, wt, bt, wc, bc)
    err = float(jnp.max(jnp.abs(out - ref)))
    assert err < 5e-2, f"max abs error vs reference: {err}"
    print("KERNEL_OK")
</pallas_src>

<mosaic_0001>
module attributes {stable_mosaic.version = 11 : i64} {
  func.func @kernel(%arg0: i32, %arg1: memref<1x16x128xf32, #tpu.memory_space<vmem>>, %arg2: memref<1x32x128xf32, #tpu.memory_space<vmem>>, %arg3: memref<2x128x128xf32, #tpu.memory_space<vmem>>, %arg4: memref<1x128xf32, #tpu.memory_space<vmem>>, %arg5: memref<3x256x128xf32, #tpu.memory_space<vmem>>, %arg6: memref<1x128xf32, #tpu.memory_space<vmem>>, %arg7: memref<1x32x128xf32, #tpu.memory_space<vmem>>, %arg8: memref<34x256xf32, #tpu.memory_space<vmem>>) attributes {dimension_semantics = [#tpu.dimension_semantics<parallel>], iteration_bounds = array<i64: 2>, scalar_prefetch = 0 : i64, scratch_operands = 1 : i64, tpu.core_type = #tpu.core_type<tc>, window_params = [{transform_indices = @transform_0, window_bounds = array<i64: 1, 16, 128>}, {transform_indices = @transform_1, window_bounds = array<i64: 1, 32, 128>}, {pipeline_mode = #tpu.pipeline_mode<synchronous>, transform_indices = @transform_2, window_bounds = array<i64: 2, 128, 128>}, {pipeline_mode = #tpu.pipeline_mode<synchronous>, transform_indices = @transform_3, window_bounds = array<i64: 1, 128>}, {pipeline_mode = #tpu.pipeline_mode<synchronous>, transform_indices = @transform_4, window_bounds = array<i64: 3, 256, 128>}, {pipeline_mode = #tpu.pipeline_mode<synchronous>, transform_indices = @transform_5, window_bounds = array<i64: 1, 128>}, {transform_indices = @transform_6, window_bounds = array<i64: 1, 32, 128>}]} {
    %c0 = arith.constant 0 : index
    %c0_0 = arith.constant 0 : index
    %c0_1 = arith.constant 0 : index
    %0 = vector.load %arg1[%c0, %c0_0, %c0_1] : memref<1x16x128xf32, #tpu.memory_space<vmem>>, vector<1x16x128xf32>
    %1 = vector.shape_cast %0 : vector<1x16x128xf32> to vector<16x128xf32>
    %c0_2 = arith.constant 0 : index
    %c0_3 = arith.constant 0 : index
    %c0_4 = arith.constant 0 : index
    %2 = vector.load %arg3[%c0_2, %c0_3, %c0_4] : memref<2x128x128xf32, #tpu.memory_space<vmem>>, vector<1x128x128xf32>
    %3 = vector.shape_cast %2 : vector<1x128x128xf32> to vector<128x128xf32>
    %cst = arith.constant dense<0.000000e+00> : vector<16x128xf32>
    %4 = tpu.matmul %1, %3, %cst {dimension_numbers = #tpu.dot_dimension_numbers<[1], [0], [0], [1], [0, 0, 1, 1], [], []>} : vector<16x128xf32>, vector<128x128xf32>, vector<16x128xf32> -> vector<16x128xf32>
    %c0_5 = arith.constant 0 : index
    %c0_6 = arith.constant 0 : index
    %5 = vector.load %arg4[%c0_5, %c0_6] : memref<1x128xf32, #tpu.memory_space<vmem>>, vector<1x128xf32>
    %6 = vector.broadcast %5 : vector<1x128xf32> to vector<16x128xf32>
    %7 = arith.addf %4, %6 : vector<16x128xf32>
    %cst_7 = arith.constant 0.000000e+00 : f32
    %8 = vector.broadcast %cst_7 : f32 to vector<16x128xf32>
    %9 = arith.maximumf %7, %8 : vector<16x128xf32>
    %c1 = arith.constant 1 : index
    %c0_8 = arith.constant 0 : index
    %c0_9 = arith.constant 0 : index
    %10 = vector.load %arg3[%c1, %c0_8, %c0_9] : memref<2x128x128xf32, #tpu.memory_space<vmem>>, vector<1x128x128xf32>
    %11 = vector.shape_cast %10 : vector<1x128x128xf32> to vector<128x128xf32>
    %cst_10 = arith.constant dense<0.000000e+00> : vector<16x128xf32>
    %12 = tpu.matmul %1, %11, %cst_10 {dimension_numbers = #tpu.dot_dimension_numbers<[1], [0], [0], [1], [0, 0, 1, 1], [], []>} : vector<16x128xf32>, vector<128x128xf32>, vector<16x128xf32> -> vector<16x128xf32>
    %c0_11 = arith.constant 0 : index
    %c0_12 = arith.constant 0 : index
    %13 = vector.load %arg4[%c0_11, %c0_12] : memref<1x128xf32, #tpu.memory_space<vmem>>, vector<1x128xf32>
    %14 = vector.broadcast %13 : vector<1x128xf32> to vector<16x128xf32>
    %15 = arith.addf %12, %14 : vector<16x128xf32>
    %cst_13 = arith.constant 0.000000e+00 : f32
    %16 = vector.broadcast %cst_13 : f32 to vector<16x128xf32>
    %17 = arith.maximumf %15, %16 : vector<16x128xf32>
    %cst_14 = arith.constant 0.000000e+00 : f32
    %18 = vector.broadcast %cst_14 : f32 to vector<1x256xf32>
    %c0_15 = arith.constant 0 : index
    %c0_16 = arith.constant 0 : index
    %19 = vector.load %arg8[%c0_15, %c0_16] : memref<34x256xf32, #tpu.memory_space<vmem>>, vector<1x256xf32>
    tpu.vector_store %arg8[%c0_15, %c0_16], %18 {strides = array<i32>} : memref<34x256xf32, #tpu.memory_space<vmem>>, vector<1x256xf32>,
    %c33 = arith.constant 33 : index
    %c0_17 = arith.constant 0 : index
    %20 = vector.load %arg8[%c33, %c0_17] : memref<34x256xf32, #tpu.memory_space<vmem>>, vector<1x256xf32>
    tpu.vector_store %arg8[%c33, %c0_17], %18 {strides = array<i32>} : memref<34x256xf32, #tpu.memory_space<vmem>>, vector<1x256xf32>,
    %c0_18 = arith.constant 0 : index
    %c0_19 = arith.constant 0 : index
    %c0_20 = arith.constant 0 : index
    %21 = vector.load %arg2[%c0_18, %c0_19, %c0_20] : memref<1x32x128xf32, #tpu.memory_space<vmem>>, vector<1x32x128xf32>
    %22 = vector.shape_cast %21 : vector<1x32x128xf32> to vector<32x128xf32>
    %c1_21 = arith.constant 1 : index
    %c128 = arith.constant 128 : index
    %23 = vector.load %arg8[%c1_21, %c128] : memref<34x256xf32, #tpu.memory_space<vmem>>, vector<32x128xf32>
    tpu.vector_store %arg8[%c1_21, %c128], %22 {strides = array<i32>} : memref<34x256xf32, #tpu.memory_space<vmem>>, vector<32x128xf32>,
    %24 = vector.extract_strided_slice %9 {offsets = [0, 0], sizes = [1, 128], strides = [1, 1]} : vector<16x128xf32> to vector<1x128xf32>
    %c1_22 = arith.constant 1 : index
    %c0_23 = arith.constant 0 : index
    %25 = vector.load %arg8[%c1_22, %c0_23] : memref<34x256xf32, #tpu.memory_space<vmem>>, vector<1x128xf32>
    tpu.vector_store %arg8[%c1_22, %c0_23], %24 {strides = array<i32>} : memref<34x256xf32, #tpu.memory_space<vmem>>, vector<1x128xf32>,
    %26 = vector.extract_strided_slice %17 {offsets = [0, 0], sizes = [1, 128], strides = [1, 1]} : vector<16x128xf32> to vector<1x128xf32>
    %c2 = arith.constant 2 : index
    %c0_24 = arith.constant 0 : index
    %27 = vector.load %arg8[%c2, %c0_24] : memref<34x256xf32, #tpu.memory_space<vmem>>, vector<1x128xf32>
    tpu.vector_store %arg8[%c2, %c0_24], %26 {strides = array<i32>} : memref<34x256xf32, #tpu.memory_space<vmem>>, vector<1x128xf32>,
    %28 = vector.extract_strided_slice %9 {offsets = [1, 0], sizes = [1, 128], strides = [1, 1]} : vector<16x128xf32> to vector<1x128xf32>
    %c3 = arith.constant 3 : index
    %c0_25 = arith.constant 0 : index
    %29 = vector.load %arg8[%c3, %c0_25] : memref<34x256xf32, #tpu.memory_space<vmem>>, vector<1x128xf32>
    tpu.vector_store %arg8[%c3, %c0_25], %28 {strides = array<i32>} : memref<34x256xf32, #tpu.memory_space<vmem>>, vector<1x128xf32>,
    %30 = vector.extract_strided_slice %17 {offsets = [1, 0], sizes = [1, 128], strides = [1, 1]} : vector<16x128xf32> to vector<1x128xf32>
    %c4 = arith.constant 4 : index
    %c0_26 = arith.constant 0 : index
    %31 = vector.load %arg8[%c4, %c0_26] : memref<34x256xf32, #tpu.memory_space<vmem>>, vector<1x128xf32>
    tpu.vector_store %arg8[%c4, %c0_26], %30 {strides = array<i32>} : memref<34x256xf32, #tpu.memory_space<vmem>>, vector<1x128xf32>,
    %32 = vector.extract_strided_slice %9 {offsets = [2, 0], sizes = [1, 128], strides = [1, 1]} : vector<16x128xf32> to vector<1x128xf32>
    %c5 = arith.constant 5 : index
    %c0_27 = arith.constant 0 : index
    %33 = vector.load %arg8[%c5, %c0_27] : memref<34x256xf32, #tpu.memory_space<vmem>>, vector<1x128xf32>
    tpu.vector_store %arg8[%c5, %c0_27], %32 {strides = array<i32>} : memref<34x256xf32, #tpu.memory_space<vmem>>, vector<1x128xf32>,
    %34 = vector.extract_strided_slice %17 {offsets = [2, 0], sizes = [1, 128], strides = [1, 1]} : vector<16x128xf32> to vector<1x128xf32>
    %c6 = arith.constant 6 : index
    %c0_28 = arith.constant 0 : index
    %35 = vector.load %arg8[%c6, %c0_28] : memref<34x256xf32, #tpu.memory_space<vmem>>, vector<1x128xf32>
    tpu.vector_store %arg8[%c6, %c0_28], %34 {strides = array<i32>} : memref<34x256xf32, #tpu.memory_space<vmem>>, vector<1x128xf32>,
    %36 = vector.extract_strided_slice %9 {offsets = [3, 0], sizes = [1, 128], strides = [1, 1]} : vector<16x128xf32> to vector<1x128xf32>
    %c7 = arith.constant 7 : index
    %c0_29 = arith.constant 0 : index
    %37 = vector.load %arg8[%c7, %c0_29] : memref<34x256xf32, #tpu.memory_space<vmem>>, vector<1x128xf32>
    tpu.vector_store %arg8[%c7, %c0_29], %36 {strides = array<i32>} : memref<34x256xf32, #tpu.memory_space<vmem>>, vector<1x128xf32>,
    %38 = vector.extract_strided_slice %17 {offsets = [3, 0], sizes = [1, 128], strides = [1, 1]} : vector<16x128xf32> to vector<1x128xf32>
    %c8 = arith.constant 8 : index
    %c0_30 = arith.constant 0 : index
    %39 = vector.load %arg8[%c8, %c0_30] : memref<34x256xf32, #tpu.memory_space<vmem>>, vector<1x128xf32>
    tpu.vector_store %arg8[%c8, %c0_30], %38 {strides = array<i32>} : memref<34x256xf32, #tpu.memory_space<vmem>>, vector<1x128xf32>,
    %40 = vector.extract_strided_slice %9 {offsets = [4, 0], sizes = [1, 128], strides = [1, 1]} : vector<16x128xf32> to vector<1x128xf32>
    %c9 = arith.constant 9 : index
    %c0_31 = arith.constant 0 : index
    %41 = vector.load %arg8[%c9, %c0_31] : memref<34x256xf32, #tpu.memory_space<vmem>>, vector<1x128xf32>
    tpu.vector_store %arg8[%c9, %c0_31], %40 {strides = array<i32>} : memref<34x256xf32, #tpu.memory_space<vmem>>, vector<1x128xf32>,
    %42 = vector.extract_strided_slice %17 {offsets = [4, 0], sizes = [1, 128], strides = [1, 1]} : vector<16x128xf32> to vector<1x128xf32>
    %c10 = arith.constant 10 : index
    %c0_32 = arith.constant 0 : index
    %43 = vector.load %arg8[%c10, %c0_32] : memref<34x256xf32, #tpu.memory_space<vmem>>, vector<1x128xf32>
    tpu.vector_store %arg8[%c10, %c0_32], %42 {strides = array<i32>} : memref<34x256xf32, #tpu.memory_space<vmem>>, vector<1x128xf32>,
    %44 = vector.extract_strided_slice %9 {offsets = [5, 0], sizes = [1, 128], strides = [1, 1]} : vector<16x128xf32> to vector<1x128xf32>
    %c11 = arith.constant 11 : index
    %c0_33 = arith.constant 0 : index
    %45 = vector.load %arg8[%c11, %c0_33] : memref<34x256xf32, #tpu.memory_space<vmem>>, vector<1x128xf32>
    tpu.vector_store %arg8[%c11, %c0_33], %44 {strides = array<i32>} : memref<34x256xf32, #tpu.memory_space<vmem>>, vector<1x128xf32>,
    %46 = vector.extract_strided_slice %17 {offsets = [5, 0], sizes = [1, 128], strides = [1, 1]} : vector<16x128xf32> to vector<1x128xf32>
    %c12 = arith.constant 12 : index
    %c0_34 = arith.constant 0 : index
    %47 = vector.load %arg8[%c12, %c0_34] : memref<34x256xf32, #tpu.memory_space<vmem>>, vector<1x128xf32>
    tpu.vector_store %arg8[%c12, %c0_34], %46 {strides = array<i32>} : memref<34x256xf32, #tpu.memory_space<vmem>>, vector<1x128xf32>,
    %48 = vector.extract_strided_slice %9 {offsets = [6, 0], sizes = [1, 128], strides = [1, 1]} : vector<16x128xf32> to vector<1x128xf32>
    %c13 = arith.constant 13 : index
    %c0_35 = arith.constant 0 : index
    %49 = vector.load %arg8[%c13, %c0_35] : memref<34x256xf32, #tpu.memory_space<vmem>>, vector<1x128xf32>
    tpu.vector_store %arg8[%c13, %c0_35], %48 {strides = array<i32>} : memref<34x256xf32, #tpu.memory_space<vmem>>, vector<1x128xf32>,
    %50 = vector.extract_strided_slice %17 {offsets = [6, 0], sizes = [1, 128], strides = [1, 1]} : vector<16x128xf32> to vector<1x128xf32>
    %c14 = arith.constant 14 : index
    %c0_36 = arith.constant 0 : index
    %51 = vector.load %arg8[%c14, %c0_36] : memref<34x256xf32, #tpu.memory_space<vmem>>, vector<1x128xf32>
    tpu.vector_store %arg8[%c14, %c0_36], %50 {strides = array<i32>} : memref<34x256xf32, #tpu.memory_space<vmem>>, vector<1x128xf32>,
    %52 = vector.extract_strided_slice %9 {offsets = [7, 0], sizes = [1, 128], strides = [1, 1]} : vector<16x128xf32> to vector<1x128xf32>
    %c15 = arith.constant 15 : index
    %c0_37 = arith.constant 0 : index
    %53 = vector.load %arg8[%c15, %c0_37] : memref<34x256xf32, #tpu.memory_space<vmem>>, vector<1x128xf32>
    tpu.vector_store %arg8[%c15, %c0_37], %52 {strides = array<i32>} : memref<34x256xf32, #tpu.memory_space<vmem>>, vector<1x128xf32>,
    %54 = vector.extract_strided_slice %17 {offsets = [7, 0], sizes = [1, 128], strides = [1, 1]} : vector<16x128xf32> to vector<1x128xf32>
    %c16 = arith.constant 16 : index
    %c0_38 = arith.constant 0 : index
    %55 = vector.load %arg8[%c16, %c0_38] : memref<34x256xf32, #tpu.memory_space<vmem>>, vector<1x128xf32>
    tpu.vector_store %arg8[%c16, %c0_38], %54 {strides = array<i32>} : memref<34x256xf32, #tpu.memory_space<vmem>>, vector<1x128xf32>,
    %56 = vector.extract_strided_slice %9 {offsets = [8, 0], sizes = [1, 128], strides = [1, 1]} : vector<16x128xf32> to vector<1x128xf32>
    %c17 = arith.constant 17 : index
    %c0_39 = arith.constant 0 : index
    %57 = vector.load %arg8[%c17, %c0_39] : memref<34x256xf32, #tpu.memory_space<vmem>>, vector<1x128xf32>
    tpu.vector_store %arg8[%c17, %c0_39], %56 {strides = array<i32>} : memref<34x256xf32, #tpu.memory_space<vmem>>, vector<1x128xf32>,
    %58 = vector.extract_strided_slice %17 {offsets = [8, 0], sizes = [1, 128], strides = [1, 1]} : vector<16x128xf32> to vector<1x128xf32>
    %c18 = arith.constant 18 : index
    %c0_40 = arith.constant 0 : index
    %59 = vector.load %arg8[%c18, %c0_40] : memref<34x256xf32, #tpu.memory_space<vmem>>, vector<1x128xf32>
    tpu.vector_store %arg8[%c18, %c0_40], %58 {strides = array<i32>} : memref<34x256xf32, #tpu.memory_space<vmem>>, vector<1x128xf32>,
    %60 = vector.extract_strided_slice %9 {offsets = [9, 0], sizes = [1, 128], strides = [1, 1]} : vector<16x128xf32> to vector<1x128xf32>
    %c19 = arith.constant 19 : index
    %c0_41 = arith.constant 0 : index
    %61 = vector.load %arg8[%c19, %c0_41] : memref<34x256xf32, #tpu.memory_space<vmem>>, vector<1x128xf32>
    tpu.vector_store %arg8[%c19, %c0_41], %60 {strides = array<i32>} : memref<34x256xf32, #tpu.memory_space<vmem>>, vector<1x128xf32>,
    %62 = vector.extract_strided_slice %17 {offsets = [9, 0], sizes = [1, 128], strides = [1, 1]} : vector<16x128xf32> to vector<1x128xf32>
    %c20 = arith.constant 20 : index
    %c0_42 = arith.constant 0 : index
    %63 = vector.load %arg8[%c20, %c0_42] : memref<34x256xf32, #tpu.memory_space<vmem>>, vector<1x128xf32>
    tpu.vector_store %arg8[%c20, %c0_42], %62 {strides = array<i32>} : memref<34x256xf32, #tpu.memory_space<vmem>>, vector<1x128xf32>,
    %64 = vector.extract_strided_slice %9 {offsets = [10, 0], sizes = [1, 128], strides = [1, 1]} : vector<16x128xf32> to vector<1x128xf32>
    %c21 = arith.constant 21 : index
    %c0_43 = arith.constant 0 : index
    %65 = vector.load %arg8[%c21, %c0_43] : memref<34x256xf32, #tpu.memory_space<vmem>>, vector<1x128xf32>
    tpu.vector_store %arg8[%c21, %c0_43], %64 {strides = array<i32>} : memref<34x256xf32, #tpu.memory_space<vmem>>, vector<1x128xf32>,
    %66 = vector.extract_strided_slice %17 {offsets = [10, 0], sizes = [1, 128], strides = [1, 1]} : vector<16x128xf32> to vector<1x128xf32>
    %c22 = arith.constant 22 : index
    %c0_44 = arith.constant 0 : index
    %67 = vector.load %arg8[%c22, %c0_44] : memref<34x256xf32, #tpu.memory_space<vmem>>, vector<1x128xf32>
    tpu.vector_store %arg8[%c22, %c0_44], %66 {strides = array<i32>} : memref<34x256xf32, #tpu.memory_space<vmem>>, vector<1x128xf32>,
    %68 = vector.extract_strided_slice %9 {offsets = [11, 0], sizes = [1, 128], strides = [1, 1]} : vector<16x128xf32> to vector<1x128xf32>
    %c23 = arith.constant 23 : index
    %c0_45 = arith.constant 0 : index
    %69 = vector.load %arg8[%c23, %c0_45] : memref<34x256xf32, #tpu.memory_space<vmem>>, vector<1x128xf32>
    tpu.vector_store %arg8[%c23, %c0_45], %68 {strides = array<i32>} : memref<34x256xf32, #tpu.memory_space<vmem>>, vector<1x128xf32>,
    %70 = vector.extract_strided_slice %17 {offsets = [11, 0], sizes = [1, 128], strides = [1, 1]} : vector<16x128xf32> to vector<1x128xf32>
    %c24 = arith.constant 24 : index
    %c0_46 = arith.constant 0 : index
    %71 = vector.load %arg8[%c24, %c0_46] : memref<34x256xf32, #tpu.memory_space<vmem>>, vector<1x128xf32>
    tpu.vector_store %arg8[%c24, %c0_46], %70 {strides = array<i32>} : memref<34x256xf32, #tpu.memory_space<vmem>>, vector<1x128xf32>,
    %72 = vector.extract_strided_slice %9 {offsets = [12, 0], sizes = [1, 128], strides = [1, 1]} : vector<16x128xf32> to vector<1x128xf32>
    %c25 = arith.constant 25 : index
    %c0_47 = arith.constant 0 : index
    %73 = vector.load %arg8[%c25, %c0_47] : memref<34x256xf32, #tpu.memory_space<vmem>>, vector<1x128xf32>
    tpu.vector_store %arg8[%c25, %c0_47], %72 {strides = array<i32>} : memref<34x256xf32, #tpu.memory_space<vmem>>, vector<1x128xf32>,
    %74 = vector.extract_strided_slice %17 {offsets = [12, 0], sizes = [1, 128], strides = [1, 1]} : vector<16x128xf32> to vector<1x128xf32>
    %c26 = arith.constant 26 : index
    %c0_48 = arith.constant 0 : index
    %75 = vector.load %arg8[%c26, %c0_48] : memref<34x256xf32, #tpu.memory_space<vmem>>, vector<1x128xf32>
    tpu.vector_store %arg8[%c26, %c0_48], %74 {strides = array<i32>} : memref<34x256xf32, #tpu.memory_space<vmem>>, vector<1x128xf32>,
    %76 = vector.extract_strided_slice %9 {offsets = [13, 0], sizes = [1, 128], strides = [1, 1]} : vector<16x128xf32> to vector<1x128xf32>
    %c27 = arith.constant 27 : index
    %c0_49 = arith.constant 0 : index
    %77 = vector.load %arg8[%c27, %c0_49] : memref<34x256xf32, #tpu.memory_space<vmem>>, vector<1x128xf32>
    tpu.vector_store %arg8[%c27, %c0_49], %76 {strides = array<i32>} : memref<34x256xf32, #tpu.memory_space<vmem>>, vector<1x128xf32>,
    %78 = vector.extract_strided_slice %17 {offsets = [13, 0], sizes = [1, 128], strides = [1, 1]} : vector<16x128xf32> to vector<1x128xf32>
    %c28 = arith.constant 28 : index
    %c0_50 = arith.constant 0 : index
    %79 = vector.load %arg8[%c28, %c0_50] : memref<34x256xf32, #tpu.memory_space<vmem>>, vector<1x128xf32>
    tpu.vector_store %arg8[%c28, %c0_50], %78 {strides = array<i32>} : memref<34x256xf32, #tpu.memory_space<vmem>>, vector<1x128xf32>,
    %80 = vector.extract_strided_slice %9 {offsets = [14, 0], sizes = [1, 128], strides = [1, 1]} : vector<16x128xf32> to vector<1x128xf32>
    %c29 = arith.constant 29 : index
    %c0_51 = arith.constant 0 : index
    %81 = vector.load %arg8[%c29, %c0_51] : memref<34x256xf32, #tpu.memory_space<vmem>>, vector<1x128xf32>
    tpu.vector_store %arg8[%c29, %c0_51], %80 {strides = array<i32>} : memref<34x256xf32, #tpu.memory_space<vmem>>, vector<1x128xf32>,
    %82 = vector.extract_strided_slice %17 {offsets = [14, 0], sizes = [1, 128], strides = [1, 1]} : vector<16x128xf32> to vector<1x128xf32>
    %c30 = arith.constant 30 : index
    %c0_52 = arith.constant 0 : index
    %83 = vector.load %arg8[%c30, %c0_52] : memref<34x256xf32, #tpu.memory_space<vmem>>, vector<1x128xf32>
    tpu.vector_store %arg8[%c30, %c0_52], %82 {strides = array<i32>} : memref<34x256xf32, #tpu.memory_space<vmem>>, vector<1x128xf32>,
    %84 = vector.extract_strided_slice %9 {offsets = [15, 0], sizes = [1, 128], strides = [1, 1]} : vector<16x128xf32> to vector<1x128xf32>
    %c31 = arith.constant 31 : index
    %c0_53 = arith.constant 0 : index
    %85 = vector.load %arg8[%c31, %c0_53] : memref<34x256xf32, #tpu.memory_space<vmem>>, vector<1x128xf32>
    tpu.vector_store %arg8[%c31, %c0_53], %84 {strides = array<i32>} : memref<34x256xf32, #tpu.memory_space<vmem>>, vector<1x128xf32>,
    %86 = vector.extract_strided_slice %17 {offsets = [15, 0], sizes = [1, 128], strides = [1, 1]} : vector<16x128xf32> to vector<1x128xf32>
    %c32 = arith.constant 32 : index
    %c0_54 = arith.constant 0 : index
    %87 = vector.load %arg8[%c32, %c0_54] : memref<34x256xf32, #tpu.memory_space<vmem>>, vector<1x128xf32>
    tpu.vector_store %arg8[%c32, %c0_54], %86 {strides = array<i32>} : memref<34x256xf32, #tpu.memory_space<vmem>>, vector<1x128xf32>,
    %c0_55 = arith.constant 0 : index
    %c0_56 = arith.constant 0 : index
    %88 = vector.load %arg8[%c0_55, %c0_56] : memref<34x256xf32, #tpu.memory_space<vmem>>, vector<32x256xf32>
    %c0_57 = arith.constant 0 : index
    %c0_58 = arith.constant 0 : index
    %c0_59 = arith.constant 0 : index
    %89 = vector.load %arg5[%c0_57, %c0_58, %c0_59] : memref<3x256x128xf32, #tpu.memory_space<vmem>>, vector<1x256x128xf32>
    %90 = vector.shape_cast %89 : vector<1x256x128xf32> to vector<256x128xf32>
    %cst_60 = arith.constant dense<0.000000e+00> : vector<32x128xf32>
    %91 = tpu.matmul %88, %90, %cst_60 {dimension_numbers = #tpu.dot_dimension_numbers<[1], [0], [0], [1], [0, 0, 1, 1], [], []>} : vector<32x256xf32>, vector<256x128xf32>, vector<32x128xf32> -> vector<32x128xf32>
    %c1_61 = arith.constant 1 : index
    %c0_62 = arith.constant 0 : index
    %92 = vector.load %arg8[%c1_61, %c0_62] : memref<34x256xf32, #tpu.memory_space<vmem>>, vector<32x256xf32>
    %c1_63 = arith.constant 1 : index
    %c0_64 = arith.constant 0 : index
    %c0_65 = arith.constant 0 : index
    %93 = vector.load %arg5[%c1_63, %c0_64, %c0_65] : memref<3x256x128xf32, #tpu.memory_space<vmem>>, vector<1x256x128xf32>
    %94 = vector.shape_cast %93 : vector<1x256x128xf32> to vector<256x128xf32>
    %cst_66 = arith.constant dense<0.000000e+00> : vector<32x128xf32>
    %95 = tpu.matmul %92, %94, %cst_66 {dimension_numbers = #tpu.dot_dimension_numbers<[1], [0], [0], [1], [0, 0, 1, 1], [], []>} : vector<32x256xf32>, vector<256x128xf32>, vector<32x128xf32> -> vector<32x128xf32>
    %96 = arith.addf %91, %95 : vector<32x128xf32>
    %c2_67 = arith.constant 2 : index
    %c0_68 = arith.constant 0 : index
    %97 = vector.load %arg8[%c2_67, %c0_68] : memref<34x256xf32, #tpu.memory_space<vmem>>, vector<32x256xf32>
    %c2_69 = arith.constant 2 : index
    %c0_70 = arith.constant 0 : index
    %c0_71 = arith.constant 0 : index
    %98 = vector.load %arg5[%c2_69, %c0_70, %c0_71] : memref<3x256x128xf32, #tpu.memory_space<vmem>>, vector<1x256x128xf32>
    %99 = vector.shape_cast %98 : vector<1x256x128xf32> to vector<256x128xf32>
    %cst_72 = arith.constant dense<0.000000e+00> : vector<32x128xf32>
    %100 = tpu.matmul %97, %99, %cst_72 {dimension_numbers = #tpu.dot_dimension_numbers<[1], [0], [0], [1], [0, 0, 1, 1], [], []>} : vector<32x256xf32>, vector<256x128xf32>, vector<32x128xf32> -> vector<32x128xf32>
    %101 = arith.addf %96, %100 : vector<32x128xf32>
    %c0_73 = arith.constant 0 : index
    %c0_74 = arith.constant 0 : index
    %102 = vector.load %arg6[%c0_73, %c0_74] : memref<1x128xf32, #tpu.memory_space<vmem>>, vector<1x128xf32>
    %103 = vector.broadcast %102 : vector<1x128xf32> to vector<32x128xf32>
    %104 = arith.addf %101, %103 : vector<32x128xf32>
    %cst_75 = arith.constant 0.000000e+00 : f32
    %105 = vector.broadcast %cst_75 : f32 to vector<32x128xf32>
    %106 = arith.maximumf %104, %105 : vector<32x128xf32>
    %c0_76 = arith.constant 0 : index
    %c0_77 = arith.constant 0 : index
    %c0_78 = arith.constant 0 : index
    %107 = vector.load %arg7[%c0_76, %c0_77, %c0_78] : memref<1x32x128xf32, #tpu.memory_space<vmem>>, vector<1x32x128xf32>
    %108 = vector.shape_cast %107 : vector<1x32x128xf32> to vector<32x128xf32>
    %109 = vector.shape_cast %106 : vector<32x128xf32> to vector<1x32x128xf32>
    tpu.vector_store %arg7[%c0_76, %c0_77, %c0_78], %109 {strides = array<i32>} : memref<1x32x128xf32, #tpu.memory_space<vmem>>, vector<1x32x128xf32>,
    return
  }
  func.func @transform_0(%arg0: i32) -> (i32, i32, i32) {
    %c0_i32 = arith.constant 0 : i32
    %c0_i32_0 = arith.constant 0 : i32
    %c0_i32_1 = arith.constant 0 : i32
    return %arg0, %c0_i32, %c0_i32_0 : i32, i32, i32
  }
  func.func @transform_1(%arg0: i32) -> (i32, i32, i32) {
    %c0_i32 = arith.constant 0 : i32
    %c0_i32_0 = arith.constant 0 : i32
    %c0_i32_1 = arith.constant 0 : i32
    return %arg0, %c0_i32, %c0_i32_0 : i32, i32, i32
  }
  func.func @transform_2(%arg0: i32) -> (i32, i32, i32) {
    %c0_i32 = arith.constant 0 : i32
    %c0_i32_0 = arith.constant 0 : i32
    %c0_i32_1 = arith.constant 0 : i32
    %c0_i32_2 = arith.constant 0 : i32
    return %c0_i32, %c0_i32_0, %c0_i32_1 : i32, i32, i32
  }
  func.func @transform_3(%arg0: i32) -> (i32, i32) {
    %c0_i32 = arith.constant 0 : i32
    %c0_i32_0 = arith.constant 0 : i32
    %c0_i32_1 = arith.constant 0 : i32
    return %c0_i32, %c0_i32_0 : i32, i32
  }
  func.func @transform_4(%arg0: i32) -> (i32, i32, i32) {
    %c0_i32 = arith.constant 0 : i32
    %c0_i32_0 = arith.constant 0 : i32
    %c0_i32_1 = arith.constant 0 : i32
    %c0_i32_2 = arith.constant 0 : i32
    return %c0_i32, %c0_i32_0, %c0_i32_1 : i32, i32, i32
  }
  func.func @transform_5(%arg0: i32) -> (i32, i32) {
    %c0_i32 = arith.constant 0 : i32
    %c0_i32_0 = arith.constant 0 : i32
    %c0_i32_1 = arith.constant 0 : i32
    return %c0_i32, %c0_i32_0 : i32, i32
  }
  func.func @transform_6(%arg0: i32) -> (i32, i32, i32) {
    %c0_i32 = arith.constant 0 : i32
    %c0_i32_0 = arith.constant 0 : i32
    %c0_i32_1 = arith.constant 0 : i32
    return %arg0, %c0_i32, %c0_i32_0 : i32, i32, i32
  }
}

</mosaic_0001>

<llo_original>
// kernel: tile.13
$region0: #{tile.13}
  #allocation0 [shape = 's32[1]{0}', space=sflag, size = 0x4, scoped, tag = 'scoped memory for tile.13']
  %s0 = inlined_call_operand.vmem [shape: f32[4], index: 0, kind: input, shape index: {}]
  %s1 = inlined_call_operand.vmem [shape: f32[32,4], index: 1, kind: output, shape index: {}]
  // Predicated region
  $region2: #{tile.13} parent=0 // pred_check
    _
  $region3: #{tile.13} parent=0 // pred_check_branch
    %3 = sbr.rel (0) target = $region5
  $region4: #{tile.13} parent=0 // pred_region
    _
  $region5: #{tile.13} parent=0 // pred_fallthru
    _
  %v4 = vld [vmem:[%s0] ss:$0 sm:$0xff]
  %5 = vst [vmem:[%s1] sm:$0xff] %v4
  %s6 = scalar_lea.vmem %s1, 8
  %7 = vst [vmem:[%s6] sm:$0xff] %v4
  %s8 = scalar_lea.vmem %s1, 16
  %9 = vst [vmem:[%s8] sm:$0xff] %v4
  %s10 = scalar_lea.vmem %s1, 24
  %11 = vst [vmem:[%s10] sm:$0xff] %v4

// kernel: tile.14
$region0: #{tile.14}
  %s0 = inlined_call_operand.vmem [shape: f32[32,4], index: 0, kind: input, shape index: {}]
  %s1 = inlined_call_operand.vmem [shape: f32[1,128], index: 1, kind: output, shape index: {}]
  $region1: #{tile.14} parent=0
    #allocation0 [shape = 'u8[4096]{0}', space=vmem, size = 0x1000, scoped, tag = 'scoped mem for output reshape']
    %v2 = vld [vmem:[%s0] sm:$0x1]
    %vm3 = vcmask 31744
    %4 = vst.msk [vmem:[#allocation0] sm:$0x1] %vm3, %v2
    %s5 = scalar_lea.vmem %s0, 31
    %v6 = vld [vmem:[%s5] sm:$0x1]
    %7 = vrot.lane.b32.xlu0 %v6, 124
    %v8 = vpop.permute.xlu0 %7
    %vm9 = vcmask 1048544
    %10 = vst.msk [vmem:[#allocation0] sm:$0x1] %vm9, %v8
    %s11 = scalar_lea.vmem %s0, 30
    %v12 = vld [vmem:[%s11] sm:$0x1]
    %13 = vrot.lane.b32.xlu0 %v12, 120
    %v14 = vpop.permute.xlu0 %13
    %vm15 = vcmask 1015744
    %16 = vst.msk [vmem:[#allocation0] sm:$0x1] %vm15, %v14
    %s17 = scalar_lea.vmem %s0, 29
    %v18 = vld [vmem:[%s17] sm:$0x1]
    %19 = vrot.lane.b32.xlu0 %v18, 116
    %v20 = vpop.permute.xlu0 %19
    %vm21 = vcmask 982944
    %22 = vst.msk [vmem:[#allocation0] sm:$0x1] %vm21, %v20
    %s23 = scalar_lea.vmem %s0, 28
    %v24 = vld [vmem:[%s23] sm:$0x1]
    %25 = vrot.lane.b32.xlu0 %v24, 112
    %v26 = vpop.permute.xlu0 %25
    %vm27 = vcmask 950144
    %28 = vst.msk [vmem:[#allocation0] sm:$0x1] %vm27, %v26
    %s29 = scalar_lea.vmem %s0, 27
    %v30 = vld [vmem:[%s29] sm:$0x1]
    %31 = vrot.lane.b32.xlu0 %v30, 108
    %v32 = vpop.permute.xlu0 %31
    %vm33 = vcmask 917344
    %34 = vst.msk [vmem:[#allocation0] sm:$0x1] %vm33, %v32
    %s35 = scalar_lea.vmem %s0, 26
    %v36 = vld [vmem:[%s35] sm:$0x1]
    %37 = vrot.lane.b32.xlu0 %v36, 104
    %v38 = vpop.permute.xlu0 %37
    %vm39 = vcmask 884544
    %40 = vst.msk [vmem:[#allocation0] sm:$0x1] %vm39, %v38
    %s41 = scalar_lea.vmem %s0, 25
    %v42 = vld [vmem:[%s41] sm:$0x1]
    %43 = vrot.lane.b32.xlu0 %v42, 100
    %v44 = vpop.permute.xlu0 %43
    %vm45 = vcmask 851744
    %46 = vst.msk [vmem:[#allocation0] sm:$0x1] %vm45, %v44
    %s47 = scalar_lea.vmem %s0, 24
    %v48 = vld [vmem:[%s47] sm:$0x1]
    %49 = vrot.lane.b32.xlu0 %v48, 96
    %v50 = vpop.permute.xlu0 %49
    %vm51 = vcmask 818944
    %52 = vst.msk [vmem:[#allocation0] sm:$0x1] %vm51, %v50
    %s53 = scalar_lea.vmem %s0, 23
    %v54 = vld [vmem:[%s53] sm:$0x1]
    %55 = vrot.lane.b32.xlu0 %v54, 92
    %v56 = vpop.permute.xlu0 %55
    %vm57 = vcmask 786144
    %58 = vst.msk [vmem:[#allocation0] sm:$0x1] %vm57, %v56
    %s59 = scalar_lea.vmem %s0, 22
    %v60 = vld [vmem:[%s59] sm:$0x1]
    %61 = vrot.lane.b32.xlu0 %v60, 88
    %v62 = vpop.permute.xlu0 %61
    %vm63 = vcmask 753344
    %64 = vst.msk [vmem:[#allocation0] sm:$0x1] %vm63, %v62
    %s65 = scalar_lea.vmem %s0, 21
    %v66 = vld [vmem:[%s65] sm:$0x1]
    %67 = vrot.lane.b32.xlu0 %v66, 84
    %v68 = vpop.permute.xlu0 %67
    %vm69 = vcmask 720544
    %70 = vst.msk [vmem:[#allocation0] sm:$0x1] %vm69, %v68
    %s71 = scalar_lea.vmem %s0, 20
    %v72 = vld [vmem:[%s71] sm:$0x1]
    %73 = vrot.lane.b32.xlu0 %v72, 80
    %v74 = vpop.permute.xlu0 %73
    %vm75 = vcmask 687744
    %76 = vst.msk [vmem:[#allocation0] sm:$0x1] %vm75, %v74
    %s77 = scalar_lea.vmem %s0, 19
    %v78 = vld [vmem:[%s77] sm:$0x1]
    %79 = vrot.lane.b32.xlu0 %v78, 76
    %v80 = vpop.permute.xlu0 %79
    %vm81 = vcmask 654944
    %82 = vst.msk [vmem:[#allocation0] sm:$0x1] %vm81, %v80
    %s83 = scalar_lea.vmem %s0, 18
    %v84 = vld [vmem:[%s83] sm:$0x1]
    %85 = vrot.lane.b32.xlu0 %v84, 72
    %v86 = vpop.permute.xlu0 %85
    %vm87 = vcmask 622144
    %88 = vst.msk [vmem:[#allocation0] sm:$0x1] %vm87, %v86
    %s89 = scalar_lea.vmem %s0, 17
    %v90 = vld [vmem:[%s89] sm:$0x1]
    %91 = vrot.lane.b32.xlu0 %v90, 68
    %v92 = vpop.permute.xlu0 %91
    %vm93 = vcmask 589344
    %94 = vst.msk [vmem:[#allocation0] sm:$0x1] %vm93, %v92
    %s95 = scalar_lea.vmem %s0, 16
    %v96 = vld [vmem:[%s95] sm:$0x1]
    %97 = vrot.lane.b32.xlu0 %v96, 64
    %v98 = vpop.permute.xlu0 %97
    %vm99 = vcmask 556544
    %100 = vst.msk [vmem:[#allocation0] sm:$0x1] %vm99, %v98
    %s101 = scalar_lea.vmem %s0, 15
    %v102 = vld [vmem:[%s101] sm:$0x1]
    %103 = vrot.lane.b32.xlu0 %v102, 60
    %v104 = vpop.permute.xlu0 %103
    %vm105 = vcmask 523744
    %106 = vst.msk [vmem:[#allocation0] sm:$0x1] %vm105, %v104
    %s107 = scalar_lea.vmem %s0, 14
    %v108 = vld [vmem:[%s107] sm:$0x1]
    %109 = vrot.lane.b32.xlu0 %v108, 56
    %v110 = vpop.permute.xlu0 %109
    %vm111 = vcmask 490944
    %112 = vst.msk [vmem:[#allocation0] sm:$0x1] %vm111, %v110
    %s113 = scalar_lea.vmem %s0, 13
    %v114 = vld [vmem:[%s113] sm:$0x1]
    %115 = vrot.lane.b32.xlu0 %v114, 52
    %v116 = vpop.permute.xlu0 %115
    %vm117 = vcmask 458144
    %118 = vst.msk [vmem:[#allocation0] sm:$0x1] %vm117, %v116
    %s119 = scalar_lea.vmem %s0, 12
    %v120 = vld [vmem:[%s119] sm:$0x1]
    %121 = vrot.lane.b32.xlu0 %v120, 48
    %v122 = vpop.permute.xlu0 %121
    %vm123 = vcmask 425344
    %124 = vst.msk [vmem:[#allocation0] sm:$0x1] %vm123, %v122
    %s125 = scalar_lea.vmem %s0, 11
    %v126 = vld [vmem:[%s125] sm:$0x1]
    %127 = vrot.lane.b32.xlu0 %v126, 44
    %v128 = vpop.permute.xlu0 %127
    %vm129 = vcmask 392544
    %130 = vst.msk [vmem:[#allocation0] sm:$0x1] %vm129, %v128
    %s131 = scalar_lea.vmem %s0, 10
    %v132 = vld [vmem:[%s131] sm:$0x1]
    %133 = vrot.lane.b32.xlu0 %v132, 40
    %v134 = vpop.permute.xlu0 %133
    %vm135 = vcmask 359744
    %136 = vst.msk [vmem:[#allocation0] sm:$0x1] %vm135, %v134
    %s137 = scalar_lea.vmem %s0, 9
    %v138 = vld [vmem:[%s137] sm:$0x1]
    %139 = vrot.lane.b32.xlu0 %v138, 36
    %v140 = vpop.permute.xlu0 %139
    %vm141 = vcmask 326944
    %142 = vst.msk [vmem:[#allocation0] sm:$0x1] %vm141, %v140
    %s143 = scalar_lea.vmem %s0, 8
    %v144 = vld [vmem:[%s143] sm:$0x1]
    %145 = vrot.lane.b32.xlu0 %v144, 32
    %v146 = vpop.permute.xlu0 %145
    %vm147 = vcmask 294144
    %148 = vst.msk [vmem:[#allocation0] sm:$0x1] %vm147, %v146
    %s149 = scalar_lea.vmem %s0, 7
    %v150 = vld [vmem:[%s149] sm:$0x1]
    %151 = vrot.lane.b32.xlu0 %v150, 28
    %v152 = vpop.permute.xlu0 %151
    %vm153 = vcmask 261344
    %154 = vst.msk [vmem:[#allocation0] sm:$0x1] %vm153, %v152
    %s155 = scalar_lea.vmem %s0, 6
    %v156 = vld [vmem:[%s155] sm:$0x1]
    %157 = vrot.lane.b32.xlu0 %v156, 24
    %v158 = vpop.permute.xlu0 %157
    %vm159 = vcmask 228544
    %160 = vst.msk [vmem:[#allocation0] sm:$0x1] %vm159, %v158
    %s161 = scalar_lea.vmem %s0, 5
    %v162 = vld [vmem:[%s161] sm:$0x1]
    %163 = vrot.lane.b32.xlu0 %v162, 20
    %v164 = vpop.permute.xlu0 %163
    %vm165 = vcmask 195744
    %166 = vst.msk [vmem:[#allocation0] sm:$0x1] %vm165, %v164
    %s167 = scalar_lea.vmem %s0, 4
    %v168 = vld [vmem:[%s167] sm:$0x1]
    %169 = vrot.lane.b32.xlu0 %v168, 16
    %v170 = vpop.permute.xlu0 %169
    %vm171 = vcmask 162944
    %172 = vst.msk [vmem:[#allocation0] sm:$0x1] %vm171, %v170
    %s173 = scalar_lea.vmem %s0, 3
    %v174 = vld [vmem:[%s173] sm:$0x1]
    %175 = vrot.lane.b32.xlu0 %v174, 12
    %v176 = vpop.permute.xlu0 %175
    %vm177 = vcmask 130144
    %178 = vst.msk [vmem:[#allocation0] sm:$0x1] %vm177, %v176
    %s179 = scalar_lea.vmem %s0, 2
    %v180 = vld [vmem:[%s179] sm:$0x1]
    %181 = vrot.lane.b32.xlu0 %v180, 8
    %v182 = vpop.permute.xlu0 %181
    %vm183 = vcmask 97344
    %184 = vst.msk [vmem:[#allocation0] sm:$0x1] %vm183, %v182
    %s185 = scalar_lea.vmem %s0, 1
    %v186 = vld [vmem:[%s185] sm:$0x1]
    %187 = vrot.lane.b32.xlu0 %v186, 4
    %v188 = vpop.permute.xlu0 %187
    %vm189 = vcmask 64544
    %190 = vst.msk [vmem:[#allocation0] sm:$0x1] %vm189, %v188
    %s192 = ssub.s32 2, 1
    %v193 = vld [vmem:[#allocation0] sm:%s192]
    %s195 = ssub.s32 2, 1
    %196 = vst [vmem:[%s1] sm:%s195] %v193

// kernel: mytc_forward.1
$region0: #{mytc_forward.1}
  #allocation0 [shape = 'u32[]', space=smem, size = 0x4, offset = 0x4, fixed_abs, tag = 'smem constant byte address 0x4 - core index']
  #allocation1 [shape = 'u32[72,128]{1,0:T(1,128)}', space=vmem, size = 0x9000, scoped, tag = 'internal scratch']
  #allocation2 [shape = 'f32[34,256]{1,0:T(8,128)}', space=vmem, size = 0xa000, scoped, tag = 'scratch operand']
  %s0 = inlined_call_operand.vmem [shape: f32[2,16,128], index: 0, kind: input, shape index: {}]
  %s1 = inlined_call_operand.vmem [shape: f32[2,32,128], index: 1, kind: input, shape index: {}]
  %s2 = inlined_call_operand.vmem [shape: f32[2,128,128], index: 2, kind: input, shape index: {}]
  %s3 = inlined_call_operand.vmem [shape: f32[1,128], index: 3, kind: input, shape index: {}]
  %s4 = inlined_call_operand.vmem [shape: f32[3,256,128], index: 4, kind: input, shape index: {}]
  %s5 = inlined_call_operand.vmem [shape: f32[1,128], index: 5, kind: input, shape index: {}]
  %s6 = inlined_call_operand.vmem [shape: f32[2,32,128], index: 6, kind: output, shape index: {}]
  %s7 = sld [smem:[#allocation0]]
  $region57: #{mytc_forward.1} parent=0
    _
  %s9 = ssub.s32 1, %s7
  %s10 = scalar_select 0, %s9, %s7
  loop: start=0, step=1, limit=4
  $region2: #{mytc_forward.1} parent=0 // loop_pre_header
    _
  $region3: #{mytc_forward.1} parent=0 // loop_header
    %s12 = sphi 0, %s16
    %p13 = scmp.ge.s32.totalorder %s12, 4
    %s22 = sphi 0, %s24
    %s25 = sphi 0, %s22
    %s26 = sphi 0, %s25
    %s42 = sphi 0, %s26
    %s48 = sphi 0, %s50
    %s51 = sphi 0, %s48
    %s52 = sphi 0, %s51
    %s68 = sphi 0, %s52
    %s72 = sphi 0, %s72
    %s74 = sphi 0, %s72
    %s75 = sphi 0, %s74
    %s89 = sphi 0, %s75
    %s93 = sphi 0, %s93
    %s95 = sphi 0, %s93
    %s96 = sphi 0, %s95
    %s110 = sphi 0, %s96
    %s114 = sphi 0, %s114
    %s116 = sphi 0, %s114
    %s117 = sphi 0, %s116
    %s131 = sphi 0, %s117
    %s135 = sphi 0, %s135
    %s137 = sphi 0, %s135
    %s138 = sphi 0, %s137
    %s152 = sphi 0, %s138
    %s158 = sphi 0, %s160
    %s161 = sphi 0, %s158
    %s162 = sphi 0, %s161
    %s178 = sphi 0, %s162
  $region4: #{mytc_forward.1} parent=0 // loop_header_branch
    %15 = sbr.rel (%p13) target = $region8
  $region5: #{mytc_forward.1} parent=0 // loop_body
    %s17 = ssub.s32 %s12, 1
    %s18 = ssub.s32 %s12, 2
    %s19 = sadd.s32 %s12, 1
    %s20 = ssub.s32 %s12, %s19
    %p21 = scmp.eq.s32.totalorder %s20, 0
    %s23 = sadd.s32 %s22, 1
    %s24 = scalar_select %p21, %s22, %s23
    %p27 = pneg %p21
    %p28 = scmp.eq.s32.totalorder %s12, 1
    %p29 = por %p27, %p28
    %p30 = scmp.ne.s32.totalorder %s22, %s25
    %p31 = scmp.eq.s32.totalorder %s12, 0
    %p32 = por %p30, %p31
    %p33 = scmp.ne.s32.totalorder %s22, %s25
    %p34 = scmp.eq.s32.totalorder %s17, 1
    %p35 = por %p33, %p34
    %p36 = scmp.ne.s32.totalorder %s25, %s26
    %p37 = scmp.eq.s32.totalorder %s17, 0
    %p38 = por %p36, %p37
    %p39 = scmp.ne.s32.totalorder %s25, %s26
    %p40 = scmp.eq.s32.totalorder %s18, 1
    %p41 = por %p39, %p40
    %p43 = scmp.ne.s32.totalorder %s26, %s42
    %p44 = scmp.eq.s32.totalorder %s18, 0
    %p45 = por %p43, %p44
    %s46 = ssub.s32 %s12, %s19
    %p47 = scmp.eq.s32.totalorder %s46, 0
    %s49 = sadd.s32 %s48, 1
    %s50 = scalar_select %p47, %s48, %s49
    %p53 = pneg %p47
    %p54 = scmp.eq.s32.totalorder %s12, 1
    %p55 = por %p53, %p54
    %p56 = scmp.ne.s32.totalorder %s48, %s51
    %p57 = scmp.eq.s32.totalorder %s12, 0
    %p58 = por %p56, %p57
    %p59 = scmp.ne.s32.totalorder %s48, %s51
    %p60 = scmp.eq.s32.totalorder %s17, 1
    %p61 = por %p59, %p60
    %p62 = scmp.ne.s32.totalorder %s51, %s52
    %p63 = scmp.eq.s32.totalorder %s17, 0
    %p64 = por %p62, %p63
    %p65 = scmp.ne.s32.totalorder %s51, %s52
    %p66 = scmp.eq.s32.totalorder %s18, 1
    %p67 = por %p65, %p66
    %p69 = scmp.ne.s32.totalorder %s52, %s68
    %p70 = scmp.eq.s32.totalorder %s18, 0
    %p71 = por %p69, %p70
    %s73 = sadd.s32 %s72, 1
    %p76 = scmp.eq.s32.totalorder %s12, 1
    %p77 = scmp.ne.s32.totalorder %s72, %s74
    %p78 = scmp.eq.s32.totalorder %s12, 0
    %p79 = por %p77, %p78
    %p80 = scmp.ne.s32.totalorder %s72, %s74
    %p81 = scmp.eq.s32.totalorder %s17, 1
    %p82 = por %p80, %p81
    %p83 = scmp.ne.s32.totalorder %s74, %s75
    %p84 = scmp.eq.s32.totalorder %s17, 0
    %p85 = por %p83, %p84
    %p86 = scmp.ne.s32.totalorder %s74, %s75
    %p87 = scmp.eq.s32.totalorder %s18, 1
    %p88 = por %p86, %p87
    %p90 = scmp.ne.s32.totalorder %s75, %s89
    %p91 = scmp.eq.s32.totalorder %s18, 0
    %p92 = por %p90, %p91
    %s94 = sadd.s32 %s93, 1
    %p97 = scmp.eq.s32.totalorder %s12, 1
    %p98 = scmp.ne.s32.totalorder %s93, %s95
    %p99 = scmp.eq.s32.totalorder %s12, 0
    %p100 = por %p98, %p99
    %p101 = scmp.ne.s32.totalorder %s93, %s95
    %p102 = scmp.eq.s32.totalorder %s17, 1
    %p103 = por %p101, %p102
    %p104 = scmp.ne.s32.totalorder %s95, %s96
    %p105 = scmp.eq.s32.totalorder %s17, 0
    %p106 = por %p104, %p105
    %p107 = scmp.ne.s32.totalorder %s95, %s96
    %p108 = scmp.eq.s32.totalorder %s18, 1
    %p109 = por %p107, %p108
    %p111 = scmp.ne.s32.totalorder %s96, %s110
    %p112 = scmp.eq.s32.totalorder %s18, 0
    %p113 = por %p111, %p112
    %s115 = sadd.s32 %s114, 1
    %p118 = scmp.eq.s32.totalorder %s12, 1
    %p119 = scmp.ne.s32.totalorder %s114, %s116
    %p120 = scmp.eq.s32.totalorder %s12, 0
    %p121 = por %p119, %p120
    %p122 = scmp.ne.s32.totalorder %s114, %s116
    %p123 = scmp.eq.s32.totalorder %s17, 1
    %p124 = por %p122, %p123
    %p125 = scmp.ne.s32.totalorder %s116, %s117
    %p126 = scmp.eq.s32.totalorder %s17, 0
    %p127 = por %p125, %p126
    %p128 = scmp.ne.s32.totalorder %s116, %s117
    %p129 = scmp.eq.s32.totalorder %s18, 1
    %p130 = por %p128, %p129
    %p132 = scmp.ne.s32.totalorder %s117, %s131
    %p133 = scmp.eq.s32.totalorder %s18, 0
    %p134 = por %p132, %p133
    %s136 = sadd.s32 %s135, 1
    %p139 = scmp.eq.s32.totalorder %s12, 1
    %p140 = scmp.ne.s32.totalorder %s135, %s137
    %p141 = scmp.eq.s32.totalorder %s12, 0
    %p142 = por %p140, %p141
    %p143 = scmp.ne.s32.totalorder %s135, %s137
    %p144 = scmp.eq.s32.totalorder %s17, 1
    %p145 = por %p143, %p144
    %p146 = scmp.ne.s32.totalorder %s137, %s138
    %p147 = scmp.eq.s32.totalorder %s17, 0
    %p148 = por %p146, %p147
    %p149 = scmp.ne.s32.totalorder %s137, %s138
    %p150 = scmp.eq.s32.totalorder %s18, 1
    %p151 = por %p149, %p150
    %p153 = scmp.ne.s32.totalorder %s138, %s152
    %p154 = scmp.eq.s32.totalorder %s18, 0
    %p155 = por %p153, %p154
    %s156 = ssub.s32 %s12, %s19
    %p157 = scmp.eq.s32.totalorder %s156, 0
    %s159 = sadd.s32 %s158, 1
    %s160 = scalar_select %p157, %s158, %s159
    %p163 = pneg %p157
    %p164 = scmp.eq.s32.totalorder %s12, 1
    %p165 = por %p163, %p164
    %p166 = scmp.ne.s32.totalorder %s158, %s161
    %p167 = scmp.eq.s32.totalorder %s12, 0
    %p168 = por %p166, %p167
    %p169 = scmp.ne.s32.totalorder %s158, %s161
    %p170 = scmp.eq.s32.totalorder %s17, 1
    %p171 = por %p169, %p170
    %p172 = scmp.ne.s32.totalorder %s161, %s162
    %p173 = scmp.eq.s32.totalorder %s17, 0
    %p174 = por %p172, %p173
    %p175 = scmp.ne.s32.totalorder %s161, %s162
    %p176 = scmp.eq.s32.totalorder %s18, 1
    %p177 = por %p175, %p176
    %p179 = scmp.ne.s32.totalorder %s162, %s178
    %p180 = scmp.eq.s32.totalorder %s18, 0
    %p181 = por %p179, %p180
    %p182 = scmp.le.s32.totalorder 1, %s12
    %p183 = scmp.lt.s32.totalorder %s12, 3
    %p184 = pnand %p182, %p183
    %p185 = pneg %p184
    // Predicated region
    $region9: #{mytc_forward.1} parent=5 // pred_check
      _
    $region10: #{mytc_forward.1} parent=5 // pred_check_branch
      %187 = sbr.rel (%p184) target = $region12
    $region11: #{mytc_forward.1} parent=5 // pred_region
      %s188 = ssub.s32 %s12, 1
      // Predicated region
      $region13: #{mytc_forward.1} parent=11 // pred_check
        %p189 = pneg %p85
      $region14: #{mytc_forward.1} parent=11 // pred_check_branch
        %191 = sbr.rel (%p189) target = $region16
      $region15: #{mytc_forward.1} parent=11 // pred_region
        _
      $region16: #{mytc_forward.1} parent=11 // pred_fallthru
        _
      // Predicated region
      $region17: #{mytc_forward.1} parent=11 // pred_check
        %p192 = pneg %p106
      $region18: #{mytc_forward.1} parent=11 // pred_check_branch
        %194 = sbr.rel (%p192) target = $region20
      $region19: #{mytc_forward.1} parent=11 // pred_region
        _
      $region20: #{mytc_forward.1} parent=11 // pred_fallthru
        _
      // Predicated region
      $region21: #{mytc_forward.1} parent=11 // pred_check
        %p195 = pneg %p127
      $region22: #{mytc_forward.1} parent=11 // pred_check_branch
        %197 = sbr.rel (%p195) target = $region24
      $region23: #{mytc_forward.1} parent=11 // pred_region
        _
      $region24: #{mytc_forward.1} parent=11 // pred_fallthru
        _
      // Predicated region
      $region25: #{mytc_forward.1} parent=11 // pred_check
        %p198 = pneg %p148
      $region26: #{mytc_forward.1} parent=11 // pred_check_branch
        %200 = sbr.rel (%p198) target = $region28
      $region27: #{mytc_forward.1} parent=11 // pred_region
        _
      $region28: #{mytc_forward.1} parent=11 // pred_fallthru
        _
    $region12: #{mytc_forward.1} parent=5 // pred_fallthru
      _
    %p201 = scmp.lt.s32.totalorder %s12, 2
    // Predicated region
    $region29: #{mytc_forward.1} parent=5 // pred_check
      %p202 = pneg %p201
    $region30: #{mytc_forward.1} parent=5 // pred_check_branch
      %204 = sbr.rel (%p202) target = $region32
    $region31: #{mytc_forward.1} parent=5 // pred_region
      // Predicated region
      $region33: #{mytc_forward.1} parent=31 // pred_check
        %p205 = pneg %p32
      $region34: #{mytc_forward.1} parent=31 // pred_check_branch
        %207 = sbr.rel (%p205) target = $region36
      $region35: #{mytc_forward.1} parent=31 // pred_region
        %p208 = scmp.lt.s32.totalorder %s12, 1
        %s209 = scalar_select %p208, %s12, 1
        %s210 = smul.addr %s209, 2
        %s211 = smul.addr %s210, 8
        %s212 = scalar_lea.vmem %s0, %s211
      $region36: #{mytc_forward.1} parent=31 // pred_fallthru
        _
      // Predicated region
      $region37: #{mytc_forward.1} parent=31 // pred_check
        %p213 = pneg %p58
      $region38: #{mytc_forward.1} parent=31 // pred_check_branch
        %215 = sbr.rel (%p213) target = $region40
      $region39: #{mytc_forward.1} parent=31 // pred_region
        %p216 = scmp.lt.s32.totalorder %s12, 1
        %s217 = scalar_select %p216, %s12, 1
        %s218 = smul.addr %s217, 4
        %s219 = smul.addr %s218, 8
        %s220 = scalar_lea.vmem %s1, %s219
      $region40: #{mytc_forward.1} parent=31 // pred_fallthru
        _
    $region32: #{mytc_forward.1} parent=5 // pred_fallthru
      _
    %p221 = scmp.le.s32.totalorder 1, %s12
    %p222 = scmp.lt.s32.totalorder %s12, 3
    %p223 = pnand %p221, %p222
    %p224 = pneg %p223
    // Predicated region
    $region41: #{mytc_forward.1} parent=5 // pred_check
      _
    $region42: #{mytc_forward.1} parent=5 // pred_check_branch
      %226 = sbr.rel (%p223) target = $region44
    $region43: #{mytc_forward.1} parent=5 // pred_region
      %s227 = ssub.s32 %s12, 1
      %p228 = scmp.lt.s32.totalorder %s17, 1
      %s229 = scalar_select %p228, %s17, 1
      %s230 = smul.addr %s229, 2
      %s231 = smul.addr %s230, 8
      %s232 = scalar_lea.vmem %s0, %s231
      %p233 = pneg %p38
      %p234 = pneg %p35
      %p235 = scmp.lt.s32.totalorder %s17, 1
      %s236 = scalar_select %p235, %s17, 1
      %s237 = smul.addr %s236, 4
      %s238 = smul.addr %s237, 8
      %s239 = scalar_lea.vmem %s1, %s238
      %p240 = pneg %p64
      %p241 = pneg %p61
      %p242 = pneg %p85
      %p243 = pneg %p82
      %p244 = pneg %p106
      %p245 = pneg %p103
      %p246 = pneg %p127
      %p247 = pneg %p124
      %p248 = pneg %p148
      %p249 = pneg %p145
      %p250 = pneg %p174
      %p251 = pneg %p171
      %p252 = scmp.lt.s32.totalorder %s17, 1
      %s253 = scalar_select %p252, %s17, 1
      %s254 = smul.addr %s253, 4
      %s255 = smul.addr %s254, 8
      %s256 = scalar_lea.vmem %s6, %s255
      %p257 = scmp.lt.s32.totalorder %s17, 1
      %s258 = scalar_select %p257, %s17, 1
      %s259 = smul.addr %s258, 2
      %s260 = smul.addr %s259, 8
      %s261 = scalar_lea.vmem %s0, %s260
      %p262 = scmp.lt.s32.totalorder %s17, 1
      %s263 = scalar_select %p262, %s17, 1
      %s264 = smul.addr %s263, 4
      %s265 = smul.addr %s264, 8
      %s266 = scalar_lea.vmem %s1, %s265
      %p267 = scmp.lt.s32.totalorder %s17, 1
      %s268 = scalar_select %p267, %s17, 1
      %s269 = smul.addr %s268, 4
      %s270 = smul.addr %s269, 8
      %s271 = scalar_lea.vmem %s6, %s270
      %v272 = vld [vmem:[%s261] sm:$0xff]
      %v273 = vld [vmem:[%s261 + $0x8] sm:$0xff]
      %v274 = vld [vmem:[%s2] sm:$0xff]
      %v275 = vld [vmem:[%s2 + $0x8] sm:$0xff]
      %v276 = vld [vmem:[%s2 + $0x10] sm:$0xff]
      %v277 = vld [vmem:[%s2 + $0x18] sm:$0xff]
      %v278 = vld [vmem:[%s2 + $0x20] sm:$0xff]
      %v279 = vld [vmem:[%s2 + $0x28] sm:$0xff]
      %v280 = vld [vmem:[%s2 + $0x30] sm:$0xff]
      %v281 = vld [vmem:[%s2 + $0x38] sm:$0xff]
      %v282 = vld [vmem:[%s2 + $0x40] sm:$0xff]
      %v283 = vld [vmem:[%s2 + $0x48] sm:$0xff]
      %v284 = vld [vmem:[%s2 + $0x50] sm:$0xff]
      %v285 = vld [vmem:[%s2 + $0x58] sm:$0xff]
      %v286 = vld [vmem:[%s2 + $0x60] sm:$0xff]
      %v287 = vld [vmem:[%s2 + $0x68] sm:$0xff]
      %v288 = vld [vmem:[%s2 + $0x70] sm:$0xff]
      %v289 = vld [vmem:[%s2 + $0x78] sm:$0xff]
      %v290 = vld [vmem:[%s3] sm:$0x1]
      %v292 = vperm.slane %v290, 0
      %294 = vmatpush.msra.mxu0 %v289
      %295 = vmatpush.msra.mxu0 %v288
      %296 = vmatpush.msra.mxu0 %v287
      %297 = vmatpush.msra.mxu0 %v286
      %298 = vmatpush.msra.mxu0 %v285
      %299 = vmatpush.msra.mxu0 %v284
      %300 = vmatpush.msra.mxu0 %v283
      %301 = vmatpush.msra.mxu0 %v282
      %302 = vmatpush.msra.mxu0 %v281
      %303 = vmatpush.msra.mxu0 %v280
      %304 = vmatpush.msra.mxu0 %v279
      %305 = vmatpush.msra.mxu0 %v278
      %306 = vmatpush.msra.mxu0 %v277
      %307 = vmatpush.msra.mxu0 %v276
      %308 = vmatpush.msra.mxu0 %v275
      %309 = vmatpush.msra.mxu0 %v274
      %310 = vmatmul.f32.gmra.mxu0 %v272
      %v311 = vpop.f32.mrf.mxu0
      %v312 = vadd.f32 %v292, %v311
      %313 = vmatmul.f32.gmra.mxu0 %v273
      %v314 = vpop.f32.mrf.mxu0
      %v315 = vadd.f32 %v292, %v314
      %316 = vdwg.mxu0
      %v317 = vmax.f32 %v312, 0.0
      %v318 = vmax.f32 %v315, 0.0
      %s319 = scalar_lea.vmem %s2, 128
      %v320 = vld [vmem:[%s319] sm:$0xff]
      %v321 = vld [vmem:[%s319 + $0x8] sm:$0xff]
      %v322 = vld [vmem:[%s319 + $0x10] sm:$0xff]
      %v323 = vld [vmem:[%s319 + $0x18] sm:$0xff]
      %v324 = vld [vmem:[%s319 + $0x20] sm:$0xff]
      %v325 = vld [vmem:[%s319 + $0x28] sm:$0xff]
      %v326 = vld [vmem:[%s319 + $0x30] sm:$0xff]
      %v327 = vld [vmem:[%s319 + $0x38] sm:$0xff]
      %v328 = vld [vmem:[%s319 + $0x40] sm:$0xff]
      %v329 = vld [vmem:[%s319 + $0x48] sm:$0xff]
      %v330 = vld [vmem:[%s319 + $0x50] sm:$0xff]
      %v331 = vld [vmem:[%s319 + $0x58] sm:$0xff]
      %v332 = vld [vmem:[%s319 + $0x60] sm:$0xff]
      %v333 = vld [vmem:[%s319 + $0x68] sm:$0xff]
      %v334 = vld [vmem:[%s319 + $0x70] sm:$0xff]
      %v335 = vld [vmem:[%s319 + $0x78] sm:$0xff]
      %336 = vmatpush.msra.mxu0 %v335
      %337 = vmatpush.msra.mxu0 %v334
      %338 = vmatpush.msra.mxu0 %v333
      %339 = vmatpush.msra.mxu0 %v332
      %340 = vmatpush.msra.mxu0 %v331
      %341 = vmatpush.msra.mxu0 %v330
      %342 = vmatpush.msra.mxu0 %v329
      %343 = vmatpush.msra.mxu0 %v328
      %344 = vmatpush.msra.mxu0 %v327
      %345 = vmatpush.msra.mxu0 %v326
      %346 = vmatpush.msra.mxu0 %v325
      %347 = vmatpush.msra.mxu0 %v324
      %348 = vmatpush.msra.mxu0 %v323
      %349 = vmatpush.msra.mxu0 %v322
      %350 = vmatpush.msra.mxu0 %v321
      %351 = vmatpush.msra.mxu0 %v320
      %352 = vmatmul.f32.gmra.mxu0 %v272
      %v353 = vpop.f32.mrf.mxu0
      %v354 = vadd.f32 %v292, %v353
      %355 = vmatmul.f32.gmra.mxu0 %v273
      %v356 = vpop.f32.mrf.mxu0
      %v357 = vadd.f32 %v292, %v356
      %358 = vdwg.mxu0
      %v359 = vmax.f32 %v354, 0.0
      %v360 = vmax.f32 %v357, 0.0
      %v361 = vlaneseq
      %vm362 = vcmp.ge.s32.totalorder %v361, 0
      %vm363 = vcmp.lt.s32.totalorder %v361, 256
      %vm364 = vmand %vm362, %vm363
      %365 = vst.msk [vmem:[#allocation2] ss:$8 sm:$0x3] %vm364, 0.0
      %366 = vst.msk [vmem:[#allocation2] ss:$8 sm:$0x0] %vm364, 0.0
      %s367 = scalar_lea.vmem [#allocation2], 65
      %368 = vst.msk [vmem:[%s367] ss:$8 sm:$0x3] %vm364, 0.0
      %369 = vst.msk [vmem:[%s367] ss:$8 sm:$0x0] %vm364, 0.0
      %v370 = vld [vmem:[%s266] sm:$0xff]
      %v371 = vld [vmem:[%s266 + $0x8] sm:$0xff]
      %v372 = vld [vmem:[%s266 + $0x10] sm:$0xff]
      %v373 = vld [vmem:[%s266 + $0x18] sm:$0xff]
      %vm378 = vcmask 1040384
      %v379 = vrot.slane %v370, 7
      %v380 = vrot.slane %v371, 7
      %v381 = vsel %vm378, %v379, %v380
      %v382 = vrot.slane %v372, 7
      %v383 = vsel %vm378, %v380, %v382
      %v384 = vrot.slane %v373, 7
      %v385 = vsel %vm378, %v382, %v384
      %391 = vst [vmem:[#allocation2 + $0x8] sm:$0xfe] %v379
      %392 = vst [vmem:[#allocation2 + $0x18] sm:$0xff] %v381
      %393 = vst [vmem:[#allocation2 + $0x28] sm:$0xff] %v383
      %394 = vst [vmem:[#allocation2 + $0x38] sm:$0xff] %v385
      %395 = vst [vmem:[#allocation2 + $0x48] sm:$0x1] %v384
      %396 = vst [vmem:[#allocation2 + $0x1] sm:$0x1] %v317
      %397 = vst [vmem:[#allocation2 + $0x2] sm:$0x1] %v359
      %v399 = vrot.slane %v317, 1
      %401 = vst [vmem:[#allocation2 + $0x3] sm:$0x1] %v399
      %v403 = vrot.slane %v359, 1
      %405 = vst [vmem:[#allocation2 + $0x4] sm:$0x1] %v403
      %v406 = vrot.slane %v317, 2
      %408 = vst [vmem:[#allocation2 + $0x5] sm:$0x1] %v406
      %v409 = vrot.slane %v359, 2
      %411 = vst [vmem:[#allocation2 + $0x6] sm:$0x1] %v409
      %v412 = vrot.slane %v317, 3
      %414 = vst [vmem:[#allocation2 + $0x7] sm:$0x1] %v412
      %v415 = vrot.slane %v359, 3
      %417 = vst [vmem:[#allocation2 + $0x10] sm:$0x1] %v415
      %v418 = vrot.slane %v317, 4
      %420 = vst [vmem:[#allocation2 + $0x11] sm:$0x1] %v418
      %v421 = vrot.slane %v359, 4
      %423 = vst [vmem:[#allocation2 + $0x12] sm:$0x1] %v421
      %v424 = vrot.slane %v317, 5
      %426 = vst [vmem:[#allocation2 + $0x13] sm:$0x1] %v424
      %v427 = vrot.slane %v359, 5
      %429 = vst [vmem:[#allocation2 + $0x14] sm:$0x1] %v427
      %v430 = vrot.slane %v317, 6
      %432 = vst [vmem:[#allocation2 + $0x15] sm:$0x1] %v430
      %v433 = vrot.slane %v359, 6
      %435 = vst [vmem:[#allocation2 + $0x16] sm:$0x1] %v433
      %v436 = vrot.slane %v317, 7
      %438 = vst [vmem:[#allocation2 + $0x17] sm:$0x1] %v436
      %v439 = vrot.slane %v359, 7
      %441 = vst [vmem:[#allocation2 + $0x20] sm:$0x1] %v439
      %442 = vst [vmem:[#allocation2 + $0x21] sm:$0x1] %v318
      %443 = vst [vmem:[#allocation2 + $0x22] sm:$0x1] %v360
      %v445 = vrot.slane %v318, 1
      %447 = vst [vmem:[#allocation2 + $0x23] sm:$0x1] %v445
      %v449 = vrot.slane %v360, 1
      %451 = vst [vmem:[#allocation2 + $0x24] sm:$0x1] %v449
      %v452 = vrot.slane %v318, 2
      %454 = vst [vmem:[#allocation2 + $0x25] sm:$0x1] %v452
      %v455 = vrot.slane %v360, 2
      %457 = vst [vmem:[#allocation2 + $0x26] sm:$0x1] %v455
      %v458 = vrot.slane %v318, 3
      %460 = vst [vmem:[#allocation2 + $0x27] sm:$0x1] %v458
      %v461 = vrot.slane %v360, 3
      %463 = vst [vmem:[#allocation2 + $0x30] sm:$0x1] %v461
      %v464 = vrot.slane %v318, 4
      %466 = vst [vmem:[#allocation2 + $0x31] sm:$0x1] %v464
      %v467 = vrot.slane %v360, 4
      %469 = vst [vmem:[#allocation2 + $0x32] sm:$0x1] %v467
      %v470 = vrot.slane %v318, 5
      %472 = vst [vmem:[#allocation2 + $0x33] sm:$0x1] %v470
      %v473 = vrot.slane %v360, 5
      %475 = vst [vmem:[#allocation2 + $0x34] sm:$0x1] %v473
      %v476 = vrot.slane %v318, 6
      %478 = vst [vmem:[#allocation2 + $0x35] sm:$0x1] %v476
      %v479 = vrot.slane %v360, 6
      %481 = vst [vmem:[#allocation2 + $0x36] sm:$0x1] %v479
      %v482 = vrot.slane %v318, 7
      %484 = vst [vmem:[#allocation2 + $0x37] sm:$0x1] %v482
      %v485 = vrot.slane %v360, 7
      %487 = vst [vmem:[#allocation2 + $0x40] sm:$0x1] %v485
      %v488 = vld [vmem:[#allocation2] sm:$0xff]
      %v489 = vld [vmem:[#allocation2 + $0x8] sm:$0xff]
      %v490 = vld [vmem:[#allocation2 + $0x10] sm:$0xff]
      %v491 = vld [vmem:[#allocation2 + $0x18] sm:$0xff]
      %v492 = vld [vmem:[#allocation2 + $0x20] sm:$0xff]
      %v493 = vld [vmem:[#allocation2 + $0x28] sm:$0xff]
      %v494 = vld [vmem:[#allocation2 + $0x30] sm:$0xff]
      %v495 = vld [vmem:[#allocation2 + $0x38] sm:$0xff]
      %v496 = vld [vmem:[%s4] sm:$0xff]
      %v497 = vld [vmem:[%s4 + $0x8] sm:$0xff]
      %v498 = vld [vmem:[%s4 + $0x10] sm:$0xff]
      %v499 = vld [vmem:[%s4 + $0x18] sm:$0xff]
      %v500 = vld [vmem:[%s4 + $0x20] sm:$0xff]
      %v501 = vld [vmem:[%s4 + $0x28] sm:$0xff]
      %v502 = vld [vmem:[%s4 + $0x30] sm:$0xff]
      %v503 = vld [vmem:[%s4 + $0x38] sm:$0xff]
      %v504 = vld [vmem:[%s4 + $0x40] sm:$0xff]
      %v505 = vld [vmem:[%s4 + $0x48] sm:$0xff]
      %v506 = vld [vmem:[%s4 + $0x50] sm:$0xff]
      %v507 = vld [vmem:[%s4 + $0x58] sm:$0xff]
      %v508 = vld [vmem:[%s4 + $0x60] sm:$0xff]
      %v509 = vld [vmem:[%s4 + $0x68] sm:$0xff]
      %v510 = vld [vmem:[%s4 + $0x70] sm:$0xff]
      %v511 = vld [vmem:[%s4 + $0x78] sm:$0xff]
      %v512 = vld [vmem:[%s4 + $0x80] sm:$0xff]
      %v513 = vld [vmem:[%s4 + $0x88] sm:$0xff]
      %v514 = vld [vmem:[%s4 + $0x90] sm:$0xff]
      %v515 = vld [vmem:[%s4 + $0x98] sm:$0xff]
      %v516 = vld [vmem:[%s4 + $0xa0] sm:$0xff]
      %v517 = vld [vmem:[%s4 + $0xa8] sm:$0xff]
      %v518 = vld [vmem:[%s4 + $0xb0] sm:$0xff]
      %v519 = vld [vmem:[%s4 + $0xb8] sm:$0xff]
      %v520 = vld [vmem:[%s4 + $0xc0] sm:$0xff]
      %v521 = vld [vmem:[%s4 + $0xc8] sm:$0xff]
      %v522 = vld [vmem:[%s4 + $0xd0] sm:$0xff]
      %v523 = vld [vmem:[%s4 + $0xd8] sm:$0xff]
      %v524 = vld [vmem:[%s4 + $0xe0] sm:$0xff]
      %v525 = vld [vmem:[%s4 + $0xe8] sm:$0xff]
      %v526 = vld [vmem:[%s4 + $0xf0] sm:$0xff]
      %v527 = vld [vmem:[%s4 + $0xf8] sm:$0xff]
      %v528 = vld [vmem:[#allocation2] sm:$0xfe]
      %v529 = vld [vmem:[#allocation2 + $0x8] sm:$0xfe]
      %v530 = vld [vmem:[#allocation2 + $0x40] sm:$0x1]
      %v531 = vld [vmem:[#allocation2 + $0x48] sm:$0x1]
      %s532 = scalar_lea.vmem %s4, 256
      %v533 = vld [vmem:[%s532] sm:$0xff]
      %v534 = vld [vmem:[%s532 + $0x8] sm:$0xff]
      %v535 = vld [vmem:[%s532 + $0x10] sm:$0xff]
      %v536 = vld [vmem:[%s532 + $0x18] sm:$0xff]
      %v537 = vld [vmem:[%s532 + $0x20] sm:$0xff]
      %v538 = vld [vmem:[%s532 + $0x28] sm:$0xff]
      %v539 = vld [vmem:[%s532 + $0x30] sm:$0xff]
      %v540 = vld [vmem:[%s532 + $0x38] sm:$0xff]
      %v541 = vld [vmem:[%s532 + $0x40] sm:$0xff]
      %v542 = vld [vmem:[%s532 + $0x48] sm:$0xff]
      %v543 = vld [vmem:[%s532 + $0x50] sm:$0xff]
      %v544 = vld [vmem:[%s532 + $0x58] sm:$0xff]
      %v545 = vld [vmem:[%s532 + $0x60] sm:$0xff]
      %v546 = vld [vmem:[%s532 + $0x68] sm:$0xff]
      %v547 = vld [vmem:[%s532 + $0x70] sm:$0xff]
      %v548 = vld [vmem:[%s532 + $0x78] sm:$0xff]
      %v549 = vld [vmem:[%s532 + $0x80] sm:$0xff]
      %v550 = vld [vmem:[%s532 + $0x88] sm:$0xff]
      %v551 = vld [vmem:[%s532 + $0x90] sm:$0xff]
      %v552 = vld [vmem:[%s532 + $0x98] sm:$0xff]
      %v553 = vld [vmem:[%s532 + $0xa0] sm:$0xff]
      %v554 = vld [vmem:[%s532 + $0xa8] sm:$0xff]
      %v555 = vld [vmem:[%s532 + $0xb0] sm:$0xff]
      %v556 = vld [vmem:[%s532 + $0xb8] sm:$0xff]
      %v557 = vld [vmem:[%s532 + $0xc0] sm:$0xff]
      %v558 = vld [vmem:[%s532 + $0xc8] sm:$0xff]
      %v559 = vld [vmem:[%s532 + $0xd0] sm:$0xff]
      %v560 = vld [vmem:[%s532 + $0xd8] sm:$0xff]
      %v561 = vld [vmem:[%s532 + $0xe0] sm:$0xff]
      %v562 = vld [vmem:[%s532 + $0xe8] sm:$0xff]
      %v563 = vld [vmem:[%s532 + $0xf0] sm:$0xff]
      %v564 = vld [vmem:[%s532 + $0xf8] sm:$0xff]
      %vm575 = vcmask 1046528
      %v576 = vrot.slane %v528, 1
      %v577 = vrot.slane %v490, 1
      %v578 = vsel %vm575, %v576, %v577
      %v579 = vrot.slane %v529, 1
      %v580 = vrot.slane %v491, 1
      %v581 = vsel %vm575, %v579, %v580
      %v582 = vrot.slane %v492, 1
      %v583 = vsel %vm575, %v577, %v582
      %v584 = vrot.slane %v493, 1
      %v585 = vsel %vm575, %v580, %v584
      %v586 = vrot.slane %v494, 1
      %v587 = vsel %vm575, %v582, %v586
      %v588 = vrot.slane %v495, 1
      %v589 = vsel %vm575, %v584, %v588
      %v590 = vrot.slane %v530, 1
      %v591 = vsel %vm575, %v586, %v590
      %v592 = vrot.slane %v531, 1
      %v593 = vsel %vm575, %v588, %v592
      %602 = vmatpush.msra.mxu0 %v548
      %603 = vmatpush.msra.mxu0 %v547
      %604 = vmatpush.msra.mxu0 %v546
      %605 = vmatpush.msra.mxu0 %v545
      %606 = vmatpush.msra.mxu0 %v544
      %607 = vmatpush.msra.mxu0 %v543
      %608 = vmatpush.msra.mxu0 %v542
      %609 = vmatpush.msra.mxu0 %v541
      %610 = vmatpush.msra.mxu0 %v540
      %611 = vmatpush.msra.mxu0 %v539
      %612 = vmatpush.msra.mxu0 %v538
      %613 = vmatpush.msra.mxu0 %v537
      %614 = vmatpush.msra.mxu0 %v536
      %615 = vmatpush.msra.mxu0 %v535
      %616 = vmatpush.msra.mxu0 %v534
      %617 = vmatpush.msra.mxu0 %v533
      %618 = vmatmul.f32.gmra.mxu0 %v578
      %v619 = vpop.f32.mrf.mxu0
      %v620 = vadd.f32 0.0, %v619
      %621 = vmatmul.f32.gmra.mxu0 %v583
      %v622 = vpop.f32.mrf.mxu0
      %v623 = vadd.f32 0.0, %v622
      %624 = vmatmul.f32.gmra.mxu0 %v587
      %v625 = vpop.f32.mrf.mxu0
      %v626 = vadd.f32 0.0, %v625
      %627 = vmatmul.f32.gmra.mxu0 %v591
      %v628 = vpop.f32.mrf.mxu0
      %v629 = vadd.f32 0.0, %v628
      %630 = vdwg.mxu0
      %631 = vmatpush.msra.mxu0 %v564
      %632 = vmatpush.msra.mxu0 %v563
      %633 = vmatpush.msra.mxu0 %v562
      %634 = vmatpush.msra.mxu0 %v561
      %635 = vmatpush.msra.mxu0 %v560
      %636 = vmatpush.msra.mxu0 %v559
      %637 = vmatpush.msra.mxu0 %v558
      %638 = vmatpush.msra.mxu0 %v557
      %639 = vmatpush.msra.mxu0 %v556
      %640 = vmatpush.msra.mxu0 %v555
      %641 = vmatpush.msra.mxu0 %v554
      %642 = vmatpush.msra.mxu0 %v553
      %643 = vmatpush.msra.mxu0 %v552
      %644 = vmatpush.msra.mxu0 %v551
      %645 = vmatpush.msra.mxu0 %v550
      %646 = vmatpush.msra.mxu0 %v549
      %647 = vmatmul.f32.gmra.mxu0 %v581
      %v648 = vpop.f32.mrf.mxu0
      %v649 = vadd.f32 %v620, %v648
      %650 = vmatmul.f32.gmra.mxu0 %v585
      %v651 = vpop.f32.mrf.mxu0
      %v652 = vadd.f32 %v623, %v651
      %653 = vmatmul.f32.gmra.mxu0 %v589
      %v654 = vpop.f32.mrf.mxu0
      %v655 = vadd.f32 %v626, %v654
      %656 = vmatmul.f32.gmra.mxu0 %v593
      %v657 = vpop.f32.mrf.mxu0
      %v658 = vadd.f32 %v629, %v657
      %659 = vdwg.mxu0
      %660 = vmatpush.msra.mxu0 %v511
      %661 = vmatpush.msra.mxu0 %v510
      %662 = vmatpush.msra.mxu0 %v509
      %663 = vmatpush.msra.mxu0 %v508
      %664 = vmatpush.msra.mxu0 %v507
      %665 = vmatpush.msra.mxu0 %v506
      %666 = vmatpush.msra.mxu0 %v505
      %667 = vmatpush.msra.mxu0 %v504
      %668 = vmatpush.msra.mxu0 %v503
      %669 = vmatpush.msra.mxu0 %v502
      %670 = vmatpush.msra.mxu0 %v501
      %671 = vmatpush.msra.mxu0 %v500
      %672 = vmatpush.msra.mxu0 %v499
      %673 = vmatpush.msra.mxu0 %v498
      %674 = vmatpush.msra.mxu0 %v497
      %675 = vmatpush.msra.mxu0 %v496
      %676 = vmatmul.f32.gmra.mxu0 %v488
      %v677 = vpop.f32.mrf.mxu0
      %v678 = vadd.f32 %v649, %v677
      %679 = vmatmul.f32.gmra.mxu0 %v490
      %v680 = vpop.f32.mrf.mxu0
      %v681 = vadd.f32 %v652, %v680
      %682 = vmatmul.f32.gmra.mxu0 %v492
      %v683 = vpop.f32.mrf.mxu0
      %v684 = vadd.f32 %v655, %v683
      %685 = vmatmul.f32.gmra.mxu0 %v494
      %v686 = vpop.f32.mrf.mxu0
      %v687 = vadd.f32 %v658, %v686
      %688 = vdwg.mxu0
      %689 = vmatpush.msra.mxu0 %v527
      %690 = vmatpush.msra.mxu0 %v526
      %691 = vmatpush.msra.mxu0 %v525
      %692 = vmatpush.msra.mxu0 %v524
      %693 = vmatpush.msra.mxu0 %v523
      %694 = vmatpush.msra.mxu0 %v522
      %695 = vmatpush.msra.mxu0 %v521
      %696 = vmatpush.msra.mxu0 %v520
      %697 = vmatpush.msra.mxu0 %v519
      %698 = vmatpush.msra.mxu0 %v518
      %699 = vmatpush.msra.mxu0 %v517
      %700 = vmatpush.msra.mxu0 %v516
      %701 = vmatpush.msra.mxu0 %v515
      %702 = vmatpush.msra.mxu0 %v514
      %703 = vmatpush.msra.mxu0 %v513
      %704 = vmatpush.msra.mxu0 %v512
      %705 = vmatmul.f32.gmra.mxu0 %v489
      %v706 = vpop.f32.mrf.mxu0
      %v707 = vadd.f32 %v678, %v706
      %708 = vmatmul.f32.gmra.mxu0 %v491
      %v709 = vpop.f32.mrf.mxu0
      %v710 = vadd.f32 %v681, %v709
      %711 = vmatmul.f32.gmra.mxu0 %v493
      %v712 = vpop.f32.mrf.mxu0
      %v713 = vadd.f32 %v684, %v712
      %714 = vmatmul.f32.gmra.mxu0 %v495
      %v715 = vpop.f32.mrf.mxu0
      %v716 = vadd.f32 %v687, %v715
      %717 = vdwg.mxu0
      %v718 = vld [vmem:[#allocation2] sm:$0xfc]
      %v719 = vld [vmem:[#allocation2 + $0x8] sm:$0xfc]
      %v720 = vld [vmem:[#allocation2 + $0x40] sm:$0x3]
      %v721 = vld [vmem:[#allocation2 + $0x48] sm:$0x3]
      %s722 = scalar_lea.vmem %s4, 512
      %v723 = vld [vmem:[%s722] sm:$0xff]
      %v724 = vld [vmem:[%s722 + $0x8] sm:$0xff]
      %v725 = vld [vmem:[%s722 + $0x10] sm:$0xff]
      %v726 = vld [vmem:[%s722 + $0x18] sm:$0xff]
      %v727 = vld [vmem:[%s722 + $0x20] sm:$0xff]
      %v728 = vld [vmem:[%s722 + $0x28] sm:$0xff]
      %v729 = vld [vmem:[%s722 + $0x30] sm:$0xff]
      %v730 = vld [vmem:[%s722 + $0x38] sm:$0xff]
      %v731 = vld [vmem:[%s722 + $0x40] sm:$0xff]
      %v732 = vld [vmem:[%s722 + $0x48] sm:$0xff]
      %v733 = vld [vmem:[%s722 + $0x50] sm:$0xff]
      %v734 = vld [vmem:[%s722 + $0x58] sm:$0xff]
      %v735 = vld [vmem:[%s722 + $0x60] sm:$0xff]
      %v736 = vld [vmem:[%s722 + $0x68] sm:$0xff]
      %v737 = vld [vmem:[%s722 + $0x70] sm:$0xff]
      %v738 = vld [vmem:[%s722 + $0x78] sm:$0xff]
      %v739 = vld [vmem:[%s722 + $0x80] sm:$0xff]
      %v740 = vld [vmem:[%s722 + $0x88] sm:$0xff]
      %v741 = vld [vmem:[%s722 + $0x90] sm:$0xff]
      %v742 = vld [vmem:[%s722 + $0x98] sm:$0xff]
      %v743 = vld [vmem:[%s722 + $0xa0] sm:$0xff]
      %v744 = vld [vmem:[%s722 + $0xa8] sm:$0xff]
      %v745 = vld [vmem:[%s722 + $0xb0] sm:$0xff]
      %v746 = vld [vmem:[%s722 + $0xb8] sm:$0xff]
      %v747 = vld [vmem:[%s722 + $0xc0] sm:$0xff]
      %v748 = vld [vmem:[%s722 + $0xc8] sm:$0xff]
      %v749 = vld [vmem:[%s722 + $0xd0] sm:$0xff]
      %v750 = vld [vmem:[%s722 + $0xd8] sm:$0xff]
      %v751 = vld [vmem:[%s722 + $0xe0] sm:$0xff]
      %v752 = vld [vmem:[%s722 + $0xe8] sm:$0xff]
      %v753 = vld [vmem:[%s722 + $0xf0] sm:$0xff]
      %v754 = vld [vmem:[%s722 + $0xf8] sm:$0xff]
      %vm759 = vcmask 1045504
      %v760 = vrot.slane %v718, 2
      %v761 = vrot.slane %v490, 2
      %v762 = vsel %vm759, %v760, %v761
      %v763 = vrot.slane %v719, 2
      %v764 = vrot.slane %v491, 2
      %v765 = vsel %vm759, %v763, %v764
      %v766 = vrot.slane %v492, 2
      %v767 = vsel %vm759, %v761, %v766
      %v768 = vrot.slane %v493, 2
      %v769 = vsel %vm759, %v764, %v768
      %v770 = vrot.slane %v494, 2
      %v771 = vsel %vm759, %v766, %v770
      %v772 = vrot.slane %v495, 2
      %v773 = vsel %vm759, %v768, %v772
      %v774 = vrot.slane %v720, 2
      %v775 = vsel %vm759, %v770, %v774
      %v776 = vrot.slane %v721, 2
      %v777 = vsel %vm759, %v772, %v776
      %786 = vmatpush.msra.mxu0 %v738
      %787 = vmatpush.msra.mxu0 %v737
      %788 = vmatpush.msra.mxu0 %v736
      %789 = vmatpush.msra.mxu0 %v735
      %790 = vmatpush.msra.mxu0 %v734
      %791 = vmatpush.msra.mxu0 %v733
      %792 = vmatpush.msra.mxu0 %v732
      %793 = vmatpush.msra.mxu0 %v731
      %794 = vmatpush.msra.mxu0 %v730
      %795 = vmatpush.msra.mxu0 %v729
      %796 = vmatpush.msra.mxu0 %v728
      %797 = vmatpush.msra.mxu0 %v727
      %798 = vmatpush.msra.mxu0 %v726
      %799 = vmatpush.msra.mxu0 %v725
      %800 = vmatpush.msra.mxu0 %v724
      %801 = vmatpush.msra.mxu0 %v723
      %802 = vmatmul.f32.gmra.mxu0 %v762
      %v803 = vpop.f32.mrf.mxu0
      %v804 = vadd.f32 0.0, %v803
      %805 = vmatmul.f32.gmra.mxu0 %v767
      %v806 = vpop.f32.mrf.mxu0
      %v807 = vadd.f32 0.0, %v806
      %808 = vmatmul.f32.gmra.mxu0 %v771
      %v809 = vpop.f32.mrf.mxu0
      %v810 = vadd.f32 0.0, %v809
      %811 = vmatmul.f32.gmra.mxu0 %v775
      %v812 = vpop.f32.mrf.mxu0
      %v813 = vadd.f32 0.0, %v812
      %814 = vdwg.mxu0
      %815 = vmatpush.msra.mxu0 %v754
      %816 = vmatpush.msra.mxu0 %v753
      %817 = vmatpush.msra.mxu0 %v752
      %818 = vmatpush.msra.mxu0 %v751
      %819 = vmatpush.msra.mxu0 %v750
      %820 = vmatpush.msra.mxu0 %v749
      %821 = vmatpush.msra.mxu0 %v748
      %822 = vmatpush.msra.mxu0 %v747
      %823 = vmatpush.msra.mxu0 %v746
      %824 = vmatpush.msra.mxu0 %v745
      %825 = vmatpush.msra.mxu0 %v744
      %826 = vmatpush.msra.mxu0 %v743
      %827 = vmatpush.msra.mxu0 %v742
      %828 = vmatpush.msra.mxu0 %v741
      %829 = vmatpush.msra.mxu0 %v740
      %830 = vmatpush.msra.mxu0 %v739
      %831 = vmatmul.f32.gmra.mxu0 %v765
      %v832 = vpop.f32.mrf.mxu0
      %v833 = vadd.f32 %v804, %v832
      %834 = vmatmul.f32.gmra.mxu0 %v769
      %v835 = vpop.f32.mrf.mxu0
      %v836 = vadd.f32 %v807, %v835
      %837 = vmatmul.f32.gmra.mxu0 %v773
      %v838 = vpop.f32.mrf.mxu0
      %v839 = vadd.f32 %v810, %v838
      %840 = vmatmul.f32.gmra.mxu0 %v777
      %v841 = vpop.f32.mrf.mxu0
      %v842 = vadd.f32 %v813, %v841
      %843 = vdwg.mxu0
      %v844 = vadd.f32 %v707, %v833
      %v845 = vadd.f32 %v710, %v836
      %v846 = vadd.f32 %v713, %v839
      %v847 = vadd.f32 %v716, %v842
      %v848 = vld [vmem:[%s5] sm:$0x1]
      %v850 = vperm.slane %v848, 0
      %v852 = vadd.f32 %v844, %v850
      %v853 = vadd.f32 %v845, %v850
      %v854 = vadd.f32 %v846, %v850
      %v855 = vadd.f32 %v847, %v850
      %v856 = vmax.f32 %v852, 0.0
      %v857 = vmax.f32 %v853, 0.0
      %v858 = vmax.f32 %v854, 0.0
      %v859 = vmax.f32 %v855, 0.0
      %860 = vst [vmem:[%s271] sm:$0xff] %v856
      %861 = vst [vmem:[%s271 + $0x8] sm:$0xff] %v857
      %862 = vst [vmem:[%s271 + $0x10] sm:$0xff] %v858
      %863 = vst [vmem:[%s271 + $0x18] sm:$0xff] %v859
      %p864 = scmp.lt.s32.totalorder %s17, 1
      %s865 = scalar_select %p864, %s17, 1
      %s866 = smul.addr %s865, 4
      %s867 = smul.addr %s866, 8
      %s868 = scalar_lea.vmem %s6, %s867
      // Predicated region
      $region45: #{mytc_forward.1} parent=43 // pred_check
        %p869 = pneg %p171
      $region46: #{mytc_forward.1} parent=43 // pred_check_branch
        %871 = sbr.rel (%p869) target = $region48
      $region47: #{mytc_forward.1} parent=43 // pred_region
        _
      $region48: #{mytc_forward.1} parent=43 // pred_fallthru
        _
    $region44: #{mytc_forward.1} parent=5 // pred_fallthru
      _
    %p872 = scmp.le.s32.totalorder 2, %s12
    // Predicated region
    $region49: #{mytc_forward.1} parent=5 // pred_check
      %p873 = pneg %p872
    $region50: #{mytc_forward.1} parent=5 // pred_check_branch
      %875 = sbr.rel (%p873) target = $region52
    $region51: #{mytc_forward.1} parent=5 // pred_region
      %s876 = ssub.s32 %s12, 2
      // Predicated region
      $region53: #{mytc_forward.1} parent=51 // pred_check
        %p877 = pneg %p177
      $region54: #{mytc_forward.1} parent=51 // pred_check_branch
        %879 = sbr.rel (%p877) target = $region56
      $region55: #{mytc_forward.1} parent=51 // pred_region
        %p880 = scmp.lt.s32.totalorder %s18, 1
        %s881 = scalar_select %p880, %s18, 1
        %s882 = smul.addr %s881, 4
        %s883 = smul.addr %s882, 8
        %s884 = scalar_lea.vmem %s6, %s883
      $region56: #{mytc_forward.1} parent=51 // pred_fallthru
        _
    $region52: #{mytc_forward.1} parent=5 // pred_fallthru
      _
  $region6: #{mytc_forward.1} parent=0 // loop_footer
    %s16 = sadd.s32 1, %s12
  $region7: #{mytc_forward.1} parent=0 // loop_footer_branch
    %11 = sbr.rel target = $region3
  $region8: #{mytc_forward.1} parent=0 // loop_exit
    _

</llo_original>
